<compile_context>
chip_gen: v6e
topology: v6e:2x2x1
jax: 0.10.0
libtpu: 0.0.40
codegen_flags: <defaults>
</compile_context>

<pallas_src>
import functools

import jax
import jax.numpy as jnp
from jax.experimental import pallas as pl
from jax.experimental.pallas import tpu as pltpu

LN_EPS = 1e-5      # torch.nn.LayerNorm default
_LANE = 128
_SUBLANE = 8


def _round_up(x, m):
    return (x + m - 1) // m * m


def _layernorm(h, gamma, beta, true_n):
    # h is lane-padded; padded columns are exactly zero, so summing over the
    # full (padded) row and dividing by the true feature count reproduces the
    # unpadded statistics.  Single pass: E[x^2] - E[x]^2 (clamped).
    inv_n = 1.0 / true_n
    mean = jnp.sum(h, axis=-1, keepdims=True) * inv_n
    mean_sq = jnp.sum(h * h, axis=-1, keepdims=True) * inv_n
    var = jnp.maximum(mean_sq - mean * mean, 0.0)
    # gamma/beta are zero in padded columns -> padded outputs stay exactly 0.
    return (h - mean) * jax.lax.rsqrt(var + LN_EPS) * gamma + beta


def actor_kernel(x_ref,
                 w1_ref, b1_ref, g1_ref, be1_ref,
                 w2_ref, b2_ref, g2_ref, be2_ref,
                 w3_ref, b3_ref,
                 o_ref, *, fc1_dims, fc2_dims):
    # bf16 activations x bf16 weights -> f32 accumulation (native MXU path).
    x = x_ref[...]                                              # [TB, in_pad] bf16

    # --- fc1 + LayerNorm + ReLU ---------------------------------------------
    h1 = jnp.dot(x, w1_ref[...], preferred_element_type=jnp.float32) + b1_ref[...]
    h1 = jnp.maximum(_layernorm(h1, g1_ref[...], be1_ref[...], fc1_dims), 0.0)

    # --- fc2 + LayerNorm ------------------------------------------------------
    h2 = jnp.dot(h1.astype(jnp.bfloat16), w2_ref[...],
                 preferred_element_type=jnp.float32) + b2_ref[...]
    h2 = _layernorm(h2, g2_ref[...], be2_ref[...], fc2_dims)

    # --- mu + tanh  (output lane-padded to 128; padded cols stay zero) -------
    out = jnp.dot(h2.astype(jnp.bfloat16), w3_ref[...],
                  preferred_element_type=jnp.float32) + b3_ref[...]
    o_ref[...] = jnp.tanh(out).astype(o_ref.dtype)              # unmasked lane-dense store


def _full_spec(arr):
    """Whole-array block, constant index map (VMEM-resident across grid steps)."""
    idx = lambda i: (0,) * arr.ndim
    try:
        # Block index never changes -> single-buffer (saves VMEM headroom).
        return pl.BlockSpec(arr.shape, idx, pipeline_mode=pl.Buffered(1))
    except TypeError:
        return pl.BlockSpec(arr.shape, idx)


def prepare_actor_params(raw):
    """One-time prep: zero-pad every tensor to lane-aligned widths and cast
    the matmul weights to bf16.  Padded weight rows/cols, biases, gamma and
    beta are all zero, so padded feature lanes stay exactly zero through every
    layer; LayerNorm statistics are recovered in-kernel by dividing by the
    true feature counts."""
    n_inputs, fc1_dims = raw["w1"].shape
    fc2_dims = raw["w2"].shape[1]
    n_actions = raw["w3"].shape[1]

    in_pad = _round_up(n_inputs, _LANE)
    fc1_pad = _round_up(fc1_dims, _LANE)
    fc2_pad = _round_up(fc2_dims, _LANE)
    act_pad = _round_up(n_actions, _LANE)

    def pad2(a, rows, cols):
        return jnp.pad(a, ((0, rows - a.shape[0]), (0, cols - a.shape[1])))

    prepared = dict(
        w1=pad2(raw["w1"], in_pad, fc1_pad).astype(jnp.bfloat16),
        b1=pad2(raw["b1"], 1, fc1_pad),
        g1=pad2(raw["g1"], 1, fc1_pad),
        be1=pad2(raw["be1"], 1, fc1_pad),
        w2=pad2(raw["w2"], fc1_pad, fc2_pad).astype(jnp.bfloat16),
        b2=pad2(raw["b2"], 1, fc2_pad),
        g2=pad2(raw["g2"], 1, fc2_pad),
        be2=pad2(raw["be2"], 1, fc2_pad),
        w3=pad2(raw["w3"], fc2_pad, act_pad).astype(jnp.bfloat16),
        b3=pad2(raw["b3"], 1, act_pad),
    )
    dims = dict(n_inputs=n_inputs, fc1_dims=fc1_dims,
                fc2_dims=fc2_dims, n_actions=n_actions)
    return prepared, dims


def actor_forward(state, params, dims):
    """state: [B, n_inputs] float32 -> [B, n_actions] float32."""
    B, n_inputs = state.shape
    in_pad, fc1_pad = params["w1"].shape
    fc2_pad = params["w2"].shape[1]
    act_pad = params["w3"].shape[1]
    n_actions = dims["n_actions"]

    # Batch tiling: big tiles amortize per-step overhead; for larger batches
    # keep >= 2 grid steps so a 2-TensorCore chip (v7x) splits the work.
    b_pad = _round_up(max(B, _SUBLANE), _SUBLANE)
    if b_pad < 256:
        tile_b = b_pad
    else:
        tile_b = min(512, _round_up(-(-b_pad // 2), _SUBLANE))
    b_pad = _round_up(b_pad, tile_b)
    grid = (b_pad // tile_b,)

    # Lane-dense bf16 LHS: pad batch + input features once, cast in wrapper.
    x = jnp.pad(state, ((0, b_pad - B), (0, in_pad - n_inputs))).astype(jnp.bfloat16)

    param_keys = ("w1", "b1", "g1", "be1", "w2", "b2", "g2", "be2", "w3", "b3")
    args = (x,) + tuple(params[k] for k in param_keys)
    in_specs = [pl.BlockSpec((tile_b, in_pad), lambda i: (i, 0))] \
        + [_full_spec(params[k]) for k in param_keys]
    out_spec = pl.BlockSpec((tile_b, act_pad), lambda i: (i, 0))

    kernel = functools.partial(actor_kernel,
                               fc1_dims=float(dims["fc1_dims"]),
                               fc2_dims=float(dims["fc2_dims"]))

    flops = 2 * b_pad * (in_pad * fc1_pad + fc1_pad * fc2_pad + fc2_pad * act_pad)
    transcendentals = b_pad * (2 + n_actions)          # 2 rsqrt/row + tanh/action
    bytes_accessed = sum(int(a.size) * a.dtype.itemsize for a in args) \
        + b_pad * act_pad * 4

    out_padded = pl.pallas_call(
        kernel,
        out_shape=jax.ShapeDtypeStruct((b_pad, act_pad), jnp.float32),
        grid=grid,
        in_specs=in_specs,
        out_specs=out_spec,
        compiler_params=pltpu.CompilerParams(
            dimension_semantics=("parallel",),
            vmem_limit_bytes=16 << 20,     # ~5 MB footprint at tile_b=512; v7x-safe
        ),
        cost_estimate=pl.CostEstimate(
            flops=flops,
            transcendentals=transcendentals,
            bytes_accessed=bytes_accessed,
        ),
    )(*args)

    return out_padded[:B, :n_actions]


def init_actor_params(key, n_inputs=8, fc1_dims=400, fc2_dims=300, n_actions=2):
    """Deterministic f32 init mirroring the PyTorch module's uniform ranges.

    PyTorch nn.Linear weight has shape (out, in); the reference code uses
    f = 1/sqrt(weight.size(0)) = 1/sqrt(out_features).  Weights here are kept
    transposed, shape (in, out).  LayerNorm affine defaults: weight=1, bias=0.
    """
    ks = jax.random.split(key, 6)

    f1 = 1.0 / jnp.sqrt(fc1_dims)
    w1 = jax.random.uniform(ks[0], (n_inputs, fc1_dims), jnp.float32, -f1, f1)
    b1 = jax.random.uniform(ks[1], (1, fc1_dims), jnp.float32, -f1, f1)

    f2 = 1.0 / jnp.sqrt(fc2_dims)
    w2 = jax.random.uniform(ks[2], (fc1_dims, fc2_dims), jnp.float32, -f2, f2)
    b2 = jax.random.uniform(ks[3], (1, fc2_dims), jnp.float32, -f2, f2)

    f3 = 0.003
    w3 = jax.random.uniform(ks[4], (fc2_dims, n_actions), jnp.float32, -f3, f3)
    b3 = jax.random.uniform(ks[5], (1, n_actions), jnp.float32, -f3, f3)

    return dict(
        w1=w1, b1=b1,
        g1=jnp.ones((1, fc1_dims), jnp.float32),
        be1=jnp.zeros((1, fc1_dims), jnp.float32),
        w2=w2, b2=b2,
        g2=jnp.ones((1, fc2_dims), jnp.float32),
        be2=jnp.zeros((1, fc2_dims), jnp.float32),
        w3=w3, b3=b3,
    )


def actor_forward_ref(state, raw):
    """Pure-JAX reference mirroring the kernel's precision path:
    bf16 weights & activations into the matmuls, f32 accumulation, f32 LN."""
    def ln(h, g, b):
        m = jnp.mean(h, -1, keepdims=True)
        msq = jnp.mean(h * h, -1, keepdims=True)
        v = jnp.maximum(msq - m * m, 0.0)
        return (h - m) * jax.lax.rsqrt(v + LN_EPS) * g + b

    bf = jnp.bfloat16
    h = jnp.dot(state.astype(bf), raw["w1"].astype(bf),
                preferred_element_type=jnp.float32) + raw["b1"]
    h = jnp.maximum(ln(h, raw["g1"], raw["be1"]), 0.0)
    h = jnp.dot(h.astype(bf), raw["w2"].astype(bf),
                preferred_element_type=jnp.float32) + raw["b2"]
    h = ln(h, raw["g2"], raw["be2"])
    out = jnp.dot(h.astype(bf), raw["w3"].astype(bf),
                  preferred_element_type=jnp.float32) + raw["b3"]
    return jnp.tanh(out)


if __name__ == "__main__":
    key = jax.random.PRNGKey(0)
    k_param, k_state = jax.random.split(key)

    B, N_INPUTS, FC1, FC2, N_ACT = 8, 8, 400, 300, 2
    raw = init_actor_params(k_param, N_INPUTS, FC1, FC2, N_ACT)
    params, dims = prepare_actor_params(raw)
    state = jax.random.normal(k_state, (B, N_INPUTS), jnp.float32)

    out = jax.block_until_ready(actor_forward(state, params, dims))
    ref = actor_forward_ref(state, raw)

    assert out.shape == (B, N_ACT)
    assert jnp.allclose(out, ref, atol=1e-4, rtol=1e-2), (
        "mismatch vs JAX reference: max abs diff "
        + str(float(jnp.max(jnp.abs(out - ref)))))

    print("KERNEL_OK")
</pallas_src>

<mosaic_0001>
module attributes {stable_mosaic.version = 11 : i64} {
  func.func @actor_kernel(%arg0: i32, %arg1: memref<8x128xbf16, #tpu.memory_space<vmem>>, %arg2: memref<128x512xbf16, #tpu.memory_space<vmem>>, %arg3: memref<1x512xf32, #tpu.memory_space<vmem>>, %arg4: memref<1x512xf32, #tpu.memory_space<vmem>>, %arg5: memref<1x512xf32, #tpu.memory_space<vmem>>, %arg6: memref<512x384xbf16, #tpu.memory_space<vmem>>, %arg7: memref<1x384xf32, #tpu.memory_space<vmem>>, %arg8: memref<1x384xf32, #tpu.memory_space<vmem>>, %arg9: memref<1x384xf32, #tpu.memory_space<vmem>>, %arg10: memref<384x128xbf16, #tpu.memory_space<vmem>>, %arg11: memref<1x128xf32, #tpu.memory_space<vmem>>, %arg12: memref<8x128xf32, #tpu.memory_space<vmem>>) attributes {dimension_semantics = [#tpu.dimension_semantics<parallel>], iteration_bounds = array<i64: 1>, scalar_prefetch = 0 : i64, scratch_operands = 0 : i64, tpu.core_type = #tpu.core_type<tc>, window_params = [{transform_indices = @transform_0, window_bounds = array<i64: 8, 128>}, {pipeline_mode = #tpu.pipeline_mode<synchronous>, transform_indices = @transform_1, window_bounds = array<i64: 128, 512>}, {pipeline_mode = #tpu.pipeline_mode<synchronous>, transform_indices = @transform_2, window_bounds = array<i64: 1, 512>}, {pipeline_mode = #tpu.pipeline_mode<synchronous>, transform_indices = @transform_3, window_bounds = array<i64: 1, 512>}, {pipeline_mode = #tpu.pipeline_mode<synchronous>, transform_indices = @transform_4, window_bounds = array<i64: 1, 512>}, {pipeline_mode = #tpu.pipeline_mode<synchronous>, transform_indices = @transform_5, window_bounds = array<i64: 512, 384>}, {pipeline_mode = #tpu.pipeline_mode<synchronous>, transform_indices = @transform_6, window_bounds = array<i64: 1, 384>}, {pipeline_mode = #tpu.pipeline_mode<synchronous>, transform_indices = @transform_7, window_bounds = array<i64: 1, 384>}, {pipeline_mode = #tpu.pipeline_mode<synchronous>, transform_indices = @transform_8, window_bounds = array<i64: 1, 384>}, {pipeline_mode = #tpu.pipeline_mode<synchronous>, transform_indices = @transform_9, window_bounds = array<i64: 384, 128>}, {pipeline_mode = #tpu.pipeline_mode<synchronous>, transform_indices = @transform_10, window_bounds = array<i64: 1, 128>}, {transform_indices = @transform_11, window_bounds = array<i64: 8, 128>}]} {
    %c0 = arith.constant 0 : index
    %c0_0 = arith.constant 0 : index
    %0 = vector.load %arg1[%c0, %c0_0] : memref<8x128xbf16, #tpu.memory_space<vmem>>, vector<8x128xbf16>
    %c0_1 = arith.constant 0 : index
    %c0_2 = arith.constant 0 : index
    %1 = vector.load %arg2[%c0_1, %c0_2] : memref<128x512xbf16, #tpu.memory_space<vmem>>, vector<128x512xbf16>
    %cst = arith.constant dense<0.000000e+00> : vector<8x512xf32>
    %2 = tpu.matmul %0, %1, %cst {dimension_numbers = #tpu.dot_dimension_numbers<[1], [0], [0], [1], [0, 0, 1, 1], [], []>} : vector<8x128xbf16>, vector<128x512xbf16>, vector<8x512xf32> -> vector<8x512xf32>
    %c0_3 = arith.constant 0 : index
    %c0_4 = arith.constant 0 : index
    %3 = vector.load %arg3[%c0_3, %c0_4] : memref<1x512xf32, #tpu.memory_space<vmem>>, vector<1x512xf32>
    %4 = vector.broadcast %3 : vector<1x512xf32> to vector<8x512xf32>
    %5 = arith.addf %2, %4 : vector<8x512xf32>
    %c0_5 = arith.constant 0 : index
    %c0_6 = arith.constant 0 : index
    %6 = vector.load %arg4[%c0_5, %c0_6] : memref<1x512xf32, #tpu.memory_space<vmem>>, vector<1x512xf32>
    %c0_7 = arith.constant 0 : index
    %c0_8 = arith.constant 0 : index
    %7 = vector.load %arg5[%c0_7, %c0_8] : memref<1x512xf32, #tpu.memory_space<vmem>>, vector<1x512xf32>
    %cst_9 = arith.constant dense<0.000000e+00> : vector<8xf32>
    %8 = vector.multi_reduction <add>, %5, %cst_9 [1] : vector<8x512xf32> to vector<8xf32>
    %9 = vector.shape_cast %8 : vector<8xf32> to vector<8x1xf32>
    %cst_10 = arith.constant 2.500000e-03 : f32
    %10 = vector.broadcast %cst_10 : f32 to vector<8x1xf32>
    %11 = arith.mulf %9, %10 : vector<8x1xf32>
    %12 = arith.mulf %5, %5 : vector<8x512xf32>
    %cst_11 = arith.constant dense<0.000000e+00> : vector<8xf32>
    %13 = vector.multi_reduction <add>, %12, %cst_11 [1] : vector<8x512xf32> to vector<8xf32>
    %14 = vector.shape_cast %13 : vector<8xf32> to vector<8x1xf32>
    %cst_12 = arith.constant 2.500000e-03 : f32
    %15 = vector.broadcast %cst_12 : f32 to vector<8x1xf32>
    %16 = arith.mulf %14, %15 : vector<8x1xf32>
    %17 = arith.mulf %11, %11 : vector<8x1xf32>
    %18 = arith.subf %16, %17 : vector<8x1xf32>
    %cst_13 = arith.constant 0.000000e+00 : f32
    %19 = vector.broadcast %cst_13 : f32 to vector<8x1xf32>
    %20 = arith.maximumf %18, %19 : vector<8x1xf32>
    %21 = vector.broadcast %11 : vector<8x1xf32> to vector<8x512xf32>
    %22 = arith.subf %5, %21 : vector<8x512xf32>
    %cst_14 = arith.constant 9.99999974E-6 : f32
    %23 = vector.broadcast %cst_14 : f32 to vector<8x1xf32>
    %24 = arith.addf %20, %23 : vector<8x1xf32>
    %25 = math.rsqrt %24 : vector<8x1xf32>
    %26 = vector.broadcast %25 : vector<8x1xf32> to vector<8x512xf32>
    %27 = arith.mulf %22, %26 : vector<8x512xf32>
    %28 = vector.broadcast %6 : vector<1x512xf32> to vector<8x512xf32>
    %29 = arith.mulf %27, %28 : vector<8x512xf32>
    %30 = vector.broadcast %7 : vector<1x512xf32> to vector<8x512xf32>
    %31 = arith.addf %29, %30 : vector<8x512xf32>
    %cst_15 = arith.constant 0.000000e+00 : f32
    %32 = vector.broadcast %cst_15 : f32 to vector<8x512xf32>
    %33 = arith.maximumf %31, %32 : vector<8x512xf32>
    %34 = arith.truncf %33 : vector<8x512xf32> to vector<8x512xbf16>
    %c0_16 = arith.constant 0 : index
    %c0_17 = arith.constant 0 : index
    %35 = vector.load %arg6[%c0_16, %c0_17] : memref<512x384xbf16, #tpu.memory_space<vmem>>, vector<512x384xbf16>
    %cst_18 = arith.constant dense<0.000000e+00> : vector<8x384xf32>
    %36 = tpu.matmul %34, %35, %cst_18 {dimension_numbers = #tpu.dot_dimension_numbers<[1], [0], [0], [1], [0, 0, 1, 1], [], []>} : vector<8x512xbf16>, vector<512x384xbf16>, vector<8x384xf32> -> vector<8x384xf32>
    %c0_19 = arith.constant 0 : index
    %c0_20 = arith.constant 0 : index
    %37 = vector.load %arg7[%c0_19, %c0_20] : memref<1x384xf32, #tpu.memory_space<vmem>>, vector<1x384xf32>
    %38 = vector.broadcast %37 : vector<1x384xf32> to vector<8x384xf32>
    %39 = arith.addf %36, %38 : vector<8x384xf32>
    %c0_21 = arith.constant 0 : index
    %c0_22 = arith.constant 0 : index
    %40 = vector.load %arg8[%c0_21, %c0_22] : memref<1x384xf32, #tpu.memory_space<vmem>>, vector<1x384xf32>
    %c0_23 = arith.constant 0 : index
    %c0_24 = arith.constant 0 : index
    %41 = vector.load %arg9[%c0_23, %c0_24] : memref<1x384xf32, #tpu.memory_space<vmem>>, vector<1x384xf32>
    %cst_25 = arith.constant dense<0.000000e+00> : vector<8xf32>
    %42 = vector.multi_reduction <add>, %39, %cst_25 [1] : vector<8x384xf32> to vector<8xf32>
    %43 = vector.shape_cast %42 : vector<8xf32> to vector<8x1xf32>
    %cst_26 = arith.constant 0.00333333341 : f32
    %44 = vector.broadcast %cst_26 : f32 to vector<8x1xf32>
    %45 = arith.mulf %43, %44 : vector<8x1xf32>
    %46 = arith.mulf %39, %39 : vector<8x384xf32>
    %cst_27 = arith.constant dense<0.000000e+00> : vector<8xf32>
    %47 = vector.multi_reduction <add>, %46, %cst_27 [1] : vector<8x384xf32> to vector<8xf32>
    %48 = vector.shape_cast %47 : vector<8xf32> to vector<8x1xf32>
    %cst_28 = arith.constant 0.00333333341 : f32
    %49 = vector.broadcast %cst_28 : f32 to vector<8x1xf32>
    %50 = arith.mulf %48, %49 : vector<8x1xf32>
    %51 = arith.mulf %45, %45 : vector<8x1xf32>
    %52 = arith.subf %50, %51 : vector<8x1xf32>
    %cst_29 = arith.constant 0.000000e+00 : f32
    %53 = vector.broadcast %cst_29 : f32 to vector<8x1xf32>
    %54 = arith.maximumf %52, %53 : vector<8x1xf32>
    %55 = vector.broadcast %45 : vector<8x1xf32> to vector<8x384xf32>
    %56 = arith.subf %39, %55 : vector<8x384xf32>
    %cst_30 = arith.constant 9.99999974E-6 : f32
    %57 = vector.broadcast %cst_30 : f32 to vector<8x1xf32>
    %58 = arith.addf %54, %57 : vector<8x1xf32>
    %59 = math.rsqrt %58 : vector<8x1xf32>
    %60 = vector.broadcast %59 : vector<8x1xf32> to vector<8x384xf32>
    %61 = arith.mulf %56, %60 : vector<8x384xf32>
    %62 = vector.broadcast %40 : vector<1x384xf32> to vector<8x384xf32>
    %63 = arith.mulf %61, %62 : vector<8x384xf32>
    %64 = vector.broadcast %41 : vector<1x384xf32> to vector<8x384xf32>
    %65 = arith.addf %63, %64 : vector<8x384xf32>
    %66 = arith.truncf %65 : vector<8x384xf32> to vector<8x384xbf16>
    %c0_31 = arith.constant 0 : index
    %c0_32 = arith.constant 0 : index
    %67 = vector.load %arg10[%c0_31, %c0_32] : memref<384x128xbf16, #tpu.memory_space<vmem>>, vector<384x128xbf16>
    %cst_33 = arith.constant dense<0.000000e+00> : vector<8x128xf32>
    %68 = tpu.matmul %66, %67, %cst_33 {dimension_numbers = #tpu.dot_dimension_numbers<[1], [0], [0], [1], [0, 0, 1, 1], [], []>} : vector<8x384xbf16>, vector<384x128xbf16>, vector<8x128xf32> -> vector<8x128xf32>
    %c0_34 = arith.constant 0 : index
    %c0_35 = arith.constant 0 : index
    %69 = vector.load %arg11[%c0_34, %c0_35] : memref<1x128xf32, #tpu.memory_space<vmem>>, vector<1x128xf32>
    %70 = vector.broadcast %69 : vector<1x128xf32> to vector<8x128xf32>
    %71 = arith.addf %68, %70 : vector<8x128xf32>
    %72 = math.tanh %71 : vector<8x128xf32>
    %c0_36 = arith.constant 0 : index
    %c0_37 = arith.constant 0 : index
    %73 = vector.load %arg12[%c0_36, %c0_37] : memref<8x128xf32, #tpu.memory_space<vmem>>, vector<8x128xf32>
    tpu.vector_store %arg12[%c0_36, %c0_37], %72 {strides = array<i32>} : memref<8x128xf32, #tpu.memory_space<vmem>>, vector<8x128xf32>,
    return
  }
  func.func @transform_0(%arg0: i32) -> (i32, i32) {
    %c0_i32 = arith.constant 0 : i32
    %c0_i32_0 = arith.constant 0 : i32
    return %arg0, %c0_i32 : i32, i32
  }
  func.func @transform_1(%arg0: i32) -> (i32, i32) {
    %c0_i32 = arith.constant 0 : i32
    %c0_i32_0 = arith.constant 0 : i32
    %c0_i32_1 = arith.constant 0 : i32
    return %c0_i32, %c0_i32_0 : i32, i32
  }
  func.func @transform_2(%arg0: i32) -> (i32, i32) {
    %c0_i32 = arith.constant 0 : i32
    %c0_i32_0 = arith.constant 0 : i32
    %c0_i32_1 = arith.constant 0 : i32
    return %c0_i32, %c0_i32_0 : i32, i32
  }
  func.func @transform_3(%arg0: i32) -> (i32, i32) {
    %c0_i32 = arith.constant 0 : i32
    %c0_i32_0 = arith.constant 0 : i32
    %c0_i32_1 = arith.constant 0 : i32
    return %c0_i32, %c0_i32_0 : i32, i32
  }
  func.func @transform_4(%arg0: i32) -> (i32, i32) {
    %c0_i32 = arith.constant 0 : i32
    %c0_i32_0 = arith.constant 0 : i32
    %c0_i32_1 = arith.constant 0 : i32
    return %c0_i32, %c0_i32_0 : i32, i32
  }
  func.func @transform_5(%arg0: i32) -> (i32, i32) {
    %c0_i32 = arith.constant 0 : i32
    %c0_i32_0 = arith.constant 0 : i32
    %c0_i32_1 = arith.constant 0 : i32
    return %c0_i32, %c0_i32_0 : i32, i32
  }
  func.func @transform_6(%arg0: i32) -> (i32, i32) {
    %c0_i32 = arith.constant 0 : i32
    %c0_i32_0 = arith.constant 0 : i32
    %c0_i32_1 = arith.constant 0 : i32
    return %c0_i32, %c0_i32_0 : i32, i32
  }
  func.func @transform_7(%arg0: i32) -> (i32, i32) {
    %c0_i32 = arith.constant 0 : i32
    %c0_i32_0 = arith.constant 0 : i32
    %c0_i32_1 = arith.constant 0 : i32
    return %c0_i32, %c0_i32_0 : i32, i32
  }
  func.func @transform_8(%arg0: i32) -> (i32, i32) {
    %c0_i32 = arith.constant 0 : i32
    %c0_i32_0 = arith.constant 0 : i32
    %c0_i32_1 = arith.constant 0 : i32
    return %c0_i32, %c0_i32_0 : i32, i32
  }
  func.func @transform_9(%arg0: i32) -> (i32, i32) {
    %c0_i32 = arith.constant 0 : i32
    %c0_i32_0 = arith.constant 0 : i32
    %c0_i32_1 = arith.constant 0 : i32
    return %c0_i32, %c0_i32_0 : i32, i32
  }
  func.func @transform_10(%arg0: i32) -> (i32, i32) {
    %c0_i32 = arith.constant 0 : i32
    %c0_i32_0 = arith.constant 0 : i32
    %c0_i32_1 = arith.constant 0 : i32
    return %c0_i32, %c0_i32_0 : i32, i32
  }
  func.func @transform_11(%arg0: i32) -> (i32, i32) {
    %c0_i32 = arith.constant 0 : i32
    %c0_i32_0 = arith.constant 0 : i32
    return %arg0, %c0_i32 : i32, i32
  }
}

</mosaic_0001>

<llo_original>
// kernel: tpu_custom_call.1
$region0: #{tpu_custom_call.1}
  #allocation0 [shape = 'u32[]', space=smem, size = 0x4, offset = 0x4, fixed_abs, tag = 'smem constant byte address 0x4 - core index']
  #allocation1 [shape = 'u32[144,128]{1,0:T(1,128)}', space=vmem, size = 0x12000, scoped, tag = 'internal scratch']
  %s0 = inlined_call_operand.hbm [shape: bf16[8,128], index: 0, kind: input, shape index: {}]
  %s1 = inlined_call_operand.hbm [shape: bf16[128,512], index: 1, kind: input, shape index: {}]
  %s2 = inlined_call_operand.hbm [shape: f32[1,512], index: 2, kind: input, shape index: {}]
  %s3 = inlined_call_operand.vmem [shape: f32[1,512], index: 3, kind: input, shape index: {}]
  %s4 = inlined_call_operand.hbm [shape: f32[1,512], index: 4, kind: input, shape index: {}]
  %s5 = inlined_call_operand.hbm [shape: bf16[512,384], index: 5, kind: input, shape index: {}]
  %s6 = inlined_call_operand.vmem [shape: f32[1,384], index: 6, kind: input, shape index: {}]
  %s7 = inlined_call_operand.vmem [shape: f32[1,384], index: 7, kind: input, shape index: {}]
  %s8 = inlined_call_operand.vmem [shape: f32[1,384], index: 8, kind: input, shape index: {}]
  %s9 = inlined_call_operand.hbm [shape: bf16[384,128], index: 9, kind: input, shape index: {}]
  %s10 = inlined_call_operand.vmem [shape: f32[1,128], index: 10, kind: input, shape index: {}]
  %s11 = inlined_call_operand.hbm [shape: f32[8,128], index: 11, kind: output, shape index: {}]
  %s12 = sld [smem:[#allocation0]]
  $region78: #{tpu_custom_call.1} parent=0
    _
  %s14 = ssub.s32 1, %s12
  %s15 = scalar_select 0, %s14, %s12
  $region1: #{tpu_custom_call.1} parent=0
    #allocation2 [shape = 'u8[2048]{0}', space=vmem, size = 0x800, scoped, tag = 'input window, operand 0, single buffered']
    #allocation3 [shape = 's32[1]{0}', space=sflag, size = 0x4, scoped, tag = 'scoped memory for tpu_custom_call.1']
    #allocation4 [shape = 's32[1]{0}', space=sflag, size = 0x4, scoped, tag = 'scoped memory for tpu_custom_call.1']
    #allocation5 [shape = 'u8[131072]{0}', space=vmem, size = 0x20000, scoped, tag = 'input window, operand 1, single buffered']
    #allocation6 [shape = 's32[1]{0}', space=sflag, size = 0x4, scoped, tag = 'scoped memory for tpu_custom_call.1']
    #allocation7 [shape = 'u8[2048]{0}', space=vmem, size = 0x800, scoped, tag = 'input window, operand 2, single buffered']
    #allocation8 [shape = 'u8[2048]{0}', space=vmem, size = 0x800, scoped, tag = 'input window, operand 4, single buffered']
    #allocation9 [shape = 's32[1]{0}', space=sflag, size = 0x4, scoped, tag = 'scoped memory for tpu_custom_call.1']
    #allocation10 [shape = 'u8[393216]{0}', space=vmem, size = 0x60000, scoped, tag = 'input window, operand 5, single buffered']
    #allocation11 [shape = 'u8[98304]{0}', space=vmem, size = 0x18000, scoped, tag = 'input window, operand 9, single buffered']
    #allocation12 [shape = 's32[1]{0}', space=sflag, size = 0x4, scoped, tag = 'scoped memory for tpu_custom_call.1']
    #allocation13 [shape = 'u8[4096]{0}', space=vmem, size = 0x1000, scoped, tag = 'output window, operand 0, single buffered']
    %16 = vsyncpa [#allocation3], 0
    %17 = vsyncpa [#allocation6], 0
    %18 = vsyncpa [#allocation9], 0
    %19 = vsyncpa [#allocation12], 0
    %20 = vsyncpa [#allocation4], 0
    // Predicated region
    $region2: #{tpu_custom_call.1} parent=1 // pred_check
      _
    $region3: #{tpu_custom_call.1} parent=1 // pred_check_branch
      %22 = sbr.rel (0) target = $region5
    $region4: #{tpu_custom_call.1} parent=1 // pred_region
      %s24 = ssub.s32 64, 64
      %25 = vsyncadd [#allocation3], %s24
      %s27 = sshll.u32 [#allocation2], 4
      %s28 = int_to_ptr.vmem [resolvable:$true] %s27
      %30 = dma.hbm_to_vmem [thread:$0]  %s0, 64, %s28, [#allocation3]
    $region5: #{tpu_custom_call.1} parent=1 // pred_fallthru
      _
    // Predicated region
    $region6: #{tpu_custom_call.1} parent=1 // pred_check
      _
    $region7: #{tpu_custom_call.1} parent=1 // pred_check_branch
      %32 = sbr.rel (0) target = $region9
    $region8: #{tpu_custom_call.1} parent=1 // pred_region
      %s34 = ssub.s32 4096, 4096
      %35 = vsyncadd [#allocation6], %s34
      %s36 = sshll.u32 [#allocation5], 4
      %s37 = int_to_ptr.vmem [resolvable:$true] %s36
      %42 = dma.hbm_to_vmem [thread:$0]  %s1, 4096, %s37, [#allocation6], 256, 256, 16
    $region9: #{tpu_custom_call.1} parent=1 // pred_fallthru
      _
    // Predicated region
    $region10: #{tpu_custom_call.1} parent=1 // pred_check
      _
    $region11: #{tpu_custom_call.1} parent=1 // pred_check_branch
      %44 = sbr.rel (0) target = $region13
    $region12: #{tpu_custom_call.1} parent=1 // pred_region
      %s46 = ssub.s32 64, 64
      %47 = vsyncadd [#allocation6], %s46
      %s49 = sshll.u32 [#allocation7], 4
      %s50 = int_to_ptr.vmem [resolvable:$true] %s49
      %52 = dma.hbm_to_vmem [thread:$0]  %s2, 64, %s50, [#allocation6]
    $region13: #{tpu_custom_call.1} parent=1 // pred_fallthru
      _
    // Predicated region
    $region14: #{tpu_custom_call.1} parent=1 // pred_check
      _
    $region15: #{tpu_custom_call.1} parent=1 // pred_check_branch
      %54 = sbr.rel (0) target = $region17
    $region16: #{tpu_custom_call.1} parent=1 // pred_region
      _
    $region17: #{tpu_custom_call.1} parent=1 // pred_fallthru
      _
    // Predicated region
    $region18: #{tpu_custom_call.1} parent=1 // pred_check
      _
    $region19: #{tpu_custom_call.1} parent=1 // pred_check_branch
      %56 = sbr.rel (0) target = $region21
    $region20: #{tpu_custom_call.1} parent=1 // pred_region
      %s58 = ssub.s32 64, 64
      %59 = vsyncadd [#allocation9], %s58
      %s61 = sshll.u32 [#allocation8], 4
      %s62 = int_to_ptr.vmem [resolvable:$true] %s61
      %64 = dma.hbm_to_vmem [thread:$0]  %s4, 64, %s62, [#allocation9]
    $region21: #{tpu_custom_call.1} parent=1 // pred_fallthru
      _
    // Predicated region
    $region22: #{tpu_custom_call.1} parent=1 // pred_check
      _
    $region23: #{tpu_custom_call.1} parent=1 // pred_check_branch
      %66 = sbr.rel (0) target = $region25
    $region24: #{tpu_custom_call.1} parent=1 // pred_region
      %s68 = ssub.s32 12288, 12288
      %69 = vsyncadd [#allocation9], %s68
      %s70 = sshll.u32 [#allocation10], 4
      %s71 = int_to_ptr.vmem [resolvable:$true] %s70
      %76 = dma.hbm_to_vmem [thread:$0]  %s5, 12288, %s71, [#allocation9], 192, 192, 12
    $region25: #{tpu_custom_call.1} parent=1 // pred_fallthru
      _
    // Predicated region
    $region26: #{tpu_custom_call.1} parent=1 // pred_check
      _
    $region27: #{tpu_custom_call.1} parent=1 // pred_check_branch
      %78 = sbr.rel (0) target = $region29
    $region28: #{tpu_custom_call.1} parent=1 // pred_region
      _
    $region29: #{tpu_custom_call.1} parent=1 // pred_fallthru
      _
    // Predicated region
    $region30: #{tpu_custom_call.1} parent=1 // pred_check
      _
    $region31: #{tpu_custom_call.1} parent=1 // pred_check_branch
      %80 = sbr.rel (0) target = $region33
    $region32: #{tpu_custom_call.1} parent=1 // pred_region
      _
    $region33: #{tpu_custom_call.1} parent=1 // pred_fallthru
      _
    // Predicated region
    $region34: #{tpu_custom_call.1} parent=1 // pred_check
      _
    $region35: #{tpu_custom_call.1} parent=1 // pred_check_branch
      %82 = sbr.rel (0) target = $region37
    $region36: #{tpu_custom_call.1} parent=1 // pred_region
      _
    $region37: #{tpu_custom_call.1} parent=1 // pred_fallthru
      _
    // Predicated region
    $region38: #{tpu_custom_call.1} parent=1 // pred_check
      _
    $region39: #{tpu_custom_call.1} parent=1 // pred_check_branch
      %84 = sbr.rel (0) target = $region41
    $region40: #{tpu_custom_call.1} parent=1 // pred_region
      %s86 = ssub.s32 3072, 3072
      %87 = vsyncadd [#allocation12], %s86
      %s88 = sshll.u32 [#allocation11], 4
      %s89 = int_to_ptr.vmem [resolvable:$true] %s88
      %94 = dma.hbm_to_vmem [thread:$0]  %s9, 3072, %s89, [#allocation12], 64, 64, 4
    $region41: #{tpu_custom_call.1} parent=1 // pred_fallthru
      _
    // Predicated region
    $region42: #{tpu_custom_call.1} parent=1 // pred_check
      _
    $region43: #{tpu_custom_call.1} parent=1 // pred_check_branch
      %96 = sbr.rel (0) target = $region45
    $region44: #{tpu_custom_call.1} parent=1 // pred_region
      _
    $region45: #{tpu_custom_call.1} parent=1 // pred_fallthru
      _
    // Predicated region
    $region46: #{tpu_custom_call.1} parent=1 // pred_check
      _
    $region47: #{tpu_custom_call.1} parent=1 // pred_check_branch
      %98 = sbr.rel (0) target = $region49
    $region48: #{tpu_custom_call.1} parent=1 // pred_region
      %99 = dma.done [#allocation3], 64
    $region49: #{tpu_custom_call.1} parent=1 // pred_fallthru
      _
    // Predicated region
    $region50: #{tpu_custom_call.1} parent=1 // pred_check
      _
    $region51: #{tpu_custom_call.1} parent=1 // pred_check_branch
      %101 = sbr.rel (0) target = $region53
    $region52: #{tpu_custom_call.1} parent=1 // pred_region
      %102 = dma.done [#allocation6], 4096
    $region53: #{tpu_custom_call.1} parent=1 // pred_fallthru
      _
    // Predicated region
    $region54: #{tpu_custom_call.1} parent=1 // pred_check
      _
    $region55: #{tpu_custom_call.1} parent=1 // pred_check_branch
      %104 = sbr.rel (0) target = $region57
    $region56: #{tpu_custom_call.1} parent=1 // pred_region
      %105 = dma.done [#allocation6], 64
    $region57: #{tpu_custom_call.1} parent=1 // pred_fallthru
      _
    // Predicated region
    $region58: #{tpu_custom_call.1} parent=1 // pred_check
      _
    $region59: #{tpu_custom_call.1} parent=1 // pred_check_branch
      %107 = sbr.rel (0) target = $region61
    $region60: #{tpu_custom_call.1} parent=1 // pred_region
      %108 = dma.done [#allocation9], 64
    $region61: #{tpu_custom_call.1} parent=1 // pred_fallthru
      _
    // Predicated region
    $region62: #{tpu_custom_call.1} parent=1 // pred_check
      _
    $region63: #{tpu_custom_call.1} parent=1 // pred_check_branch
      %110 = sbr.rel (0) target = $region65
    $region64: #{tpu_custom_call.1} parent=1 // pred_region
      %111 = dma.done [#allocation9], 12288
    $region65: #{tpu_custom_call.1} parent=1 // pred_fallthru
      _
    // Predicated region
    $region66: #{tpu_custom_call.1} parent=1 // pred_check
      _
    $region67: #{tpu_custom_call.1} parent=1 // pred_check_branch
      %113 = sbr.rel (0) target = $region69
    $region68: #{tpu_custom_call.1} parent=1 // pred_region
      %114 = dma.done [#allocation12], 3072
    $region69: #{tpu_custom_call.1} parent=1 // pred_fallthru
      _
    %v116 = vld [vmem:[#allocation2] sm:$0xf]
    %v117 = vld [vmem:[#allocation5] sm:$0xff]
    %v118 = vld [vmem:[#allocation5 + $0x8] sm:$0xff]
    %v119 = vld [vmem:[#allocation5 + $0x10] sm:$0xff]
    %v120 = vld [vmem:[#allocation5 + $0x18] sm:$0xff]
    %v121 = vld [vmem:[#allocation5 + $0x20] sm:$0xff]
    %v122 = vld [vmem:[#allocation5 + $0x28] sm:$0xff]
    %v123 = vld [vmem:[#allocation5 + $0x30] sm:$0xff]
    %v124 = vld [vmem:[#allocation5 + $0x38] sm:$0xff]
    %v125 = vld [vmem:[#allocation5 + $0x40] sm:$0xff]
    %v126 = vld [vmem:[#allocation5 + $0x48] sm:$0xff]
    %v127 = vld [vmem:[#allocation5 + $0x50] sm:$0xff]
    %v128 = vld [vmem:[#allocation5 + $0x58] sm:$0xff]
    %v129 = vld [vmem:[#allocation5 + $0x60] sm:$0xff]
    %v130 = vld [vmem:[#allocation5 + $0x68] sm:$0xff]
    %v131 = vld [vmem:[#allocation5 + $0x70] sm:$0xff]
    %v132 = vld [vmem:[#allocation5 + $0x78] sm:$0xff]
    %v133 = vld [vmem:[#allocation5 + $0x80] sm:$0xff]
    %v134 = vld [vmem:[#allocation5 + $0x88] sm:$0xff]
    %v135 = vld [vmem:[#allocation5 + $0x90] sm:$0xff]
    %v136 = vld [vmem:[#allocation5 + $0x98] sm:$0xff]
    %v137 = vld [vmem:[#allocation5 + $0xa0] sm:$0xff]
    %v138 = vld [vmem:[#allocation5 + $0xa8] sm:$0xff]
    %v139 = vld [vmem:[#allocation5 + $0xb0] sm:$0xff]
    %v140 = vld [vmem:[#allocation5 + $0xb8] sm:$0xff]
    %v141 = vld [vmem:[#allocation5 + $0xc0] sm:$0xff]
    %v142 = vld [vmem:[#allocation5 + $0xc8] sm:$0xff]
    %v143 = vld [vmem:[#allocation5 + $0xd0] sm:$0xff]
    %v144 = vld [vmem:[#allocation5 + $0xd8] sm:$0xff]
    %v145 = vld [vmem:[#allocation5 + $0xe0] sm:$0xff]
    %v146 = vld [vmem:[#allocation5 + $0xe8] sm:$0xff]
    %v147 = vld [vmem:[#allocation5 + $0xf0] sm:$0xff]
    %v148 = vld [vmem:[#allocation5 + $0xf8] sm:$0xff]
    %v149 = vld [vmem:[#allocation7] sm:$0xf]
    %v151 = vlaneseq
    %v152 = vshrl.u32 %v151, 7
    %v153 = vsub.s32 0, %v152
    %v154 = vrot.slane %v149, %v153
    %v155 = vlaneseq
    %v156 = vshrl.u32 %v155, 7
    %v157 = vsub.s32 1, %v156
    %v158 = vrot.slane %v149, %v157
    %v159 = vlaneseq
    %v160 = vshrl.u32 %v159, 7
    %v161 = vsub.s32 2, %v160
    %v162 = vrot.slane %v149, %v161
    %v163 = vlaneseq
    %v164 = vshrl.u32 %v163, 7
    %v165 = vsub.s32 3, %v164
    %v166 = vrot.slane %v149, %v165
    %v203 = vunpack.c.l.b16 %v117
    %v204 = vunpack.c.h.b16 %v117
    %v205 = vunpack.c.l.b16 %v118
    %v206 = vunpack.c.h.b16 %v118
    %v207 = vunpack.c.l.b16 %v119
    %v208 = vunpack.c.h.b16 %v119
    %v209 = vunpack.c.l.b16 %v120
    %v210 = vunpack.c.h.b16 %v120
    %v211 = vunpack.c.l.b16 %v121
    %v212 = vunpack.c.h.b16 %v121
    %v213 = vunpack.c.l.b16 %v122
    %v214 = vunpack.c.h.b16 %v122
    %v215 = vunpack.c.l.b16 %v123
    %v216 = vunpack.c.h.b16 %v123
    %v217 = vunpack.c.l.b16 %v124
    %v218 = vunpack.c.h.b16 %v124
    %v219 = vunpack.c.l.b16 %v125
    %v220 = vunpack.c.h.b16 %v125
    %v221 = vunpack.c.l.b16 %v126
    %v222 = vunpack.c.h.b16 %v126
    %v223 = vunpack.c.l.b16 %v127
    %v224 = vunpack.c.h.b16 %v127
    %v225 = vunpack.c.l.b16 %v128
    %v226 = vunpack.c.h.b16 %v128
    %v227 = vunpack.c.l.b16 %v129
    %v228 = vunpack.c.h.b16 %v129
    %v229 = vunpack.c.l.b16 %v130
    %v230 = vunpack.c.h.b16 %v130
    %v231 = vunpack.c.l.b16 %v131
    %v232 = vunpack.c.h.b16 %v131
    %v233 = vunpack.c.l.b16 %v132
    %v234 = vunpack.c.h.b16 %v132
    %v235 = vunpack.c.l.b16 %v133
    %v236 = vunpack.c.h.b16 %v133
    %v237 = vunpack.c.l.b16 %v134
    %v238 = vunpack.c.h.b16 %v134
    %v239 = vunpack.c.l.b16 %v135
    %v240 = vunpack.c.h.b16 %v135
    %v241 = vunpack.c.l.b16 %v136
    %v242 = vunpack.c.h.b16 %v136
    %v243 = vunpack.c.l.b16 %v137
    %v244 = vunpack.c.h.b16 %v137
    %v245 = vunpack.c.l.b16 %v138
    %v246 = vunpack.c.h.b16 %v138
    %v247 = vunpack.c.l.b16 %v139
    %v248 = vunpack.c.h.b16 %v139
    %v249 = vunpack.c.l.b16 %v140
    %v250 = vunpack.c.h.b16 %v140
    %v251 = vunpack.c.l.b16 %v141
    %v252 = vunpack.c.h.b16 %v141
    %v253 = vunpack.c.l.b16 %v142
    %v254 = vunpack.c.h.b16 %v142
    %v255 = vunpack.c.l.b16 %v143
    %v256 = vunpack.c.h.b16 %v143
    %v257 = vunpack.c.l.b16 %v144
    %v258 = vunpack.c.h.b16 %v144
    %v259 = vunpack.c.l.b16 %v145
    %v260 = vunpack.c.h.b16 %v145
    %v261 = vunpack.c.l.b16 %v146
    %v262 = vunpack.c.h.b16 %v146
    %v263 = vunpack.c.l.b16 %v147
    %v264 = vunpack.c.h.b16 %v147
    %v265 = vunpack.c.l.b16 %v148
    %v266 = vunpack.c.h.b16 %v148
    %v267 = vpack.c.b16 %v207, %v203
    %v268 = vpack.c.b16 %v208, %v204
    %v269 = vpack.c.b16 %v209, %v205
    %v270 = vpack.c.b16 %v210, %v206
    %v271 = vpack.c.b16 %v215, %v211
    %v272 = vpack.c.b16 %v216, %v212
    %v273 = vpack.c.b16 %v217, %v213
    %v274 = vpack.c.b16 %v218, %v214
    %v275 = vpack.c.b16 %v223, %v219
    %v276 = vpack.c.b16 %v224, %v220
    %v277 = vpack.c.b16 %v225, %v221
    %v278 = vpack.c.b16 %v226, %v222
    %v279 = vpack.c.b16 %v231, %v227
    %v280 = vpack.c.b16 %v232, %v228
    %v281 = vpack.c.b16 %v233, %v229
    %v282 = vpack.c.b16 %v234, %v230
    %v283 = vpack.c.b16 %v239, %v235
    %v284 = vpack.c.b16 %v240, %v236
    %v285 = vpack.c.b16 %v241, %v237
    %v286 = vpack.c.b16 %v242, %v238
    %v287 = vpack.c.b16 %v247, %v243
    %v288 = vpack.c.b16 %v248, %v244
    %v289 = vpack.c.b16 %v249, %v245
    %v290 = vpack.c.b16 %v250, %v246
    %v291 = vpack.c.b16 %v255, %v251
    %v292 = vpack.c.b16 %v256, %v252
    %v293 = vpack.c.b16 %v257, %v253
    %v294 = vpack.c.b16 %v258, %v254
    %v295 = vpack.c.b16 %v263, %v259
    %v296 = vpack.c.b16 %v264, %v260
    %v297 = vpack.c.b16 %v265, %v261
    %v298 = vpack.c.b16 %v266, %v262
    %331 = vmatprep.subr.bf16.mxu0 %v296
    %332 = vmatpush1.bf16.msra.mxu0 %v295
    %333 = vmatprep.subr.bf16.mxu0 %v292
    %334 = vmatpush1.bf16.msra.mxu0 %v291
    %335 = vmatprep.subr.bf16.mxu0 %v288
    %336 = vmatpush1.bf16.msra.mxu0 %v287
    %337 = vmatprep.subr.bf16.mxu0 %v284
    %338 = vmatpush1.bf16.msra.mxu0 %v283
    %339 = vmatprep.subr.bf16.mxu0 %v280
    %340 = vmatpush1.bf16.msra.mxu0 %v279
    %341 = vmatprep.subr.bf16.mxu0 %v276
    %342 = vmatpush1.bf16.msra.mxu0 %v275
    %343 = vmatprep.subr.bf16.mxu0 %v272
    %344 = vmatpush1.bf16.msra.mxu0 %v271
    %345 = vmatprep.subr.bf16.mxu0 %v268
    %346 = vmatpush1.bf16.msra.mxu0 %v267
    %347 = vmatprep.subr.bf16.mxu0 0
    %348 = vmatpush2.bf16.msra.mxu0 0
    %349 = vmatprep.subr.bf16.mxu0 0
    %350 = vmatpush2.bf16.msra.mxu0 0
    %351 = vmatprep.subr.bf16.mxu0 0
    %352 = vmatpush2.bf16.msra.mxu0 0
    %353 = vmatprep.subr.bf16.mxu0 0
    %354 = vmatpush2.bf16.msra.mxu0 0
    %355 = vmatprep.subr.bf16.mxu0 0
    %356 = vmatpush2.bf16.msra.mxu0 0
    %357 = vmatprep.subr.bf16.mxu0 0
    %358 = vmatpush2.bf16.msra.mxu0 0
    %359 = vmatprep.subr.bf16.mxu0 0
    %360 = vmatpush2.bf16.msra.mxu0 0
    %361 = vmatprep.subr.bf16.mxu0 0
    %362 = vmatpush2.bf16.msra.mxu0 0
    %363 = vmatprep.mubr.bf16.mxu0 0
    %364 = vmatmul.mubr.bf16.gmra.mxu0 %v116
    %v365 = vpop.f32.mrf.mxu0
    %v366 = vadd.f32 %v154, %v365
    %v367 = vpop.f32.mrf.mxu0
    %v368 = vadd.f32 %v158, %v367
    %v369 = vpop.f32.mrf.mxu0
    %v370 = vpop.f32.mrf.mxu0
    %371 = vdwg.mxu0
    %372 = vmatprep.subr.bf16.mxu0 %v298
    %373 = vmatpush1.bf16.msra.mxu0 %v297
    %374 = vmatprep.subr.bf16.mxu0 %v294
    %375 = vmatpush1.bf16.msra.mxu0 %v293
    %376 = vmatprep.subr.bf16.mxu0 %v290
    %377 = vmatpush1.bf16.msra.mxu0 %v289
    %378 = vmatprep.subr.bf16.mxu0 %v286
    %379 = vmatpush1.bf16.msra.mxu0 %v285
    %380 = vmatprep.subr.bf16.mxu0 %v282
    %381 = vmatpush1.bf16.msra.mxu0 %v281
    %382 = vmatprep.subr.bf16.mxu0 %v278
    %383 = vmatpush1.bf16.msra.mxu0 %v277
    %384 = vmatprep.subr.bf16.mxu0 %v274
    %385 = vmatpush1.bf16.msra.mxu0 %v273
    %386 = vmatprep.subr.bf16.mxu0 %v270
    %387 = vmatpush1.bf16.msra.mxu0 %v269
    %388 = vmatprep.subr.bf16.mxu0 0
    %389 = vmatpush2.bf16.msra.mxu0 0
    %390 = vmatprep.subr.bf16.mxu0 0
    %391 = vmatpush2.bf16.msra.mxu0 0
    %392 = vmatprep.subr.bf16.mxu0 0
    %393 = vmatpush2.bf16.msra.mxu0 0
    %394 = vmatprep.subr.bf16.mxu0 0
    %395 = vmatpush2.bf16.msra.mxu0 0
    %396 = vmatprep.subr.bf16.mxu0 0
    %397 = vmatpush2.bf16.msra.mxu0 0
    %398 = vmatprep.subr.bf16.mxu0 0
    %399 = vmatpush2.bf16.msra.mxu0 0
    %400 = vmatprep.subr.bf16.mxu0 0
    %401 = vmatpush2.bf16.msra.mxu0 0
    %402 = vmatprep.subr.bf16.mxu0 0
    %403 = vmatpush2.bf16.msra.mxu0 0
    %404 = vmatprep.mubr.bf16.mxu0 0
    %405 = vmatmul.mubr.bf16.gmra.mxu0 %v116
    %v406 = vpop.f32.mrf.mxu0
    %v407 = vadd.f32 %v162, %v406
    %v408 = vpop.f32.mrf.mxu0
    %v409 = vadd.f32 %v166, %v408
    %v410 = vpop.f32.mrf.mxu0
    %v411 = vpop.f32.mrf.mxu0
    %412 = vdwg.mxu0
    %v413 = vld [vmem:[%s3] sm:$0xf]
    %v414 = vld [vmem:[#allocation8] sm:$0xf]
    %v415 = vadd.f32 %v366, %v368
    %v416 = vadd.f32 %v415, %v407
    %v417 = vadd.f32 %v416, %v409
    %418 = vadd.xlane.f32.xlu0 %v417
    %v419 = vpop.xlane.xlu0 %418
    %v420 = vmul.f32 %v419, 0.0025
    %v421 = vmul.f32 %v366, %v366
    %v422 = vmul.f32 %v368, %v368
    %v423 = vmul.f32 %v407, %v407
    %v424 = vmul.f32 %v409, %v409
    %v425 = vadd.f32 %v421, %v422
    %v426 = vadd.f32 %v425, %v423
    %v427 = vadd.f32 %v426, %v424
    %428 = vadd.xlane.f32.xlu0 %v427
    %v429 = vpop.xlane.xlu0 %428
    %v430 = vmul.f32 %v429, 0.0025
    %v431 = vmul.f32 %v420, %v420
    %v432 = vsub.f32 %v430, %v431
    %v433 = vmax.f32 %v432, 0.0
    %v434 = vsub.f32 %v366, %v420
    %v435 = vsub.f32 %v368, %v420
    %v436 = vsub.f32 %v407, %v420
    %v437 = vsub.f32 %v409, %v420
    %v438 = vadd.f32 %v433, 1e-05
    %v439 = vrsqrt.pop %v438
    %v440 = vmul.f32 %v434, %v439
    %v441 = vmul.f32 %v435, %v439
    %v442 = vmul.f32 %v436, %v439
    %v443 = vmul.f32 %v437, %v439
    %v445 = vlaneseq
    %v446 = vshrl.u32 %v445, 7
    %v447 = vsub.s32 0, %v446
    %v448 = vrot.slane %v413, %v447
    %v449 = vlaneseq
    %v450 = vshrl.u32 %v449, 7
    %v451 = vsub.s32 1, %v450
    %v452 = vrot.slane %v413, %v451
    %v453 = vlaneseq
    %v454 = vshrl.u32 %v453, 7
    %v455 = vsub.s32 2, %v454
    %v456 = vrot.slane %v413, %v455
    %v457 = vlaneseq
    %v458 = vshrl.u32 %v457, 7
    %v459 = vsub.s32 3, %v458
    %v460 = vrot.slane %v413, %v459
    %v465 = vmul.f32 %v440, %v448
    %v466 = vmul.f32 %v441, %v452
    %v467 = vmul.f32 %v442, %v456
    %v468 = vmul.f32 %v443, %v460
    %v470 = vlaneseq
    %v471 = vshrl.u32 %v470, 7
    %v472 = vsub.s32 0, %v471
    %v473 = vrot.slane %v414, %v472
    %v474 = vlaneseq
    %v475 = vshrl.u32 %v474, 7
    %v476 = vsub.s32 1, %v475
    %v477 = vrot.slane %v414, %v476
    %v478 = vlaneseq
    %v479 = vshrl.u32 %v478, 7
    %v480 = vsub.s32 2, %v479
    %v481 = vrot.slane %v414, %v480
    %v482 = vlaneseq
    %v483 = vshrl.u32 %v482, 7
    %v484 = vsub.s32 3, %v483
    %v485 = vrot.slane %v414, %v484
    %v490 = vadd.f32 %v465, %v473
    %v491 = vadd.f32 %v466, %v477
    %v492 = vadd.f32 %v467, %v481
    %v493 = vadd.f32 %v468, %v485
    %v494 = vmax.f32 %v490, 0.0
    %v495 = vmax.f32 %v491, 0.0
    %v496 = vmax.f32 %v492, 0.0
    %v497 = vmax.f32 %v493, 0.0
    %v498 = vpack.c.bf16 %v494, %v494
    %v499 = vpack.c.bf16 %v495, %v495
    %v500 = vpack.c.bf16 %v496, %v496
    %v501 = vpack.c.bf16 %v497, %v497
    %v502 = vld [vmem:[#allocation10] sm:$0xff]
    %v503 = vld [vmem:[#allocation10 + $0x8] sm:$0xf]
    %v504 = vld [vmem:[#allocation10 + $0xc] sm:$0xff]
    %v505 = vld [vmem:[#allocation10 + $0x14] sm:$0xf]
    %v506 = vld [vmem:[#allocation10 + $0x18] sm:$0xff]
    %v507 = vld [vmem:[#allocation10 + $0x20] sm:$0xf]
    %v508 = vld [vmem:[#allocation10 + $0x24] sm:$0xff]
    %v509 = vld [vmem:[#allocation10 + $0x2c] sm:$0xf]
    %v510 = vld [vmem:[#allocation10 + $0x30] sm:$0xff]
    %v511 = vld [vmem:[#allocation10 + $0x38] sm:$0xf]
    %v512 = vld [vmem:[#allocation10 + $0x3c] sm:$0xff]
    %v513 = vld [vmem:[#allocation10 + $0x44] sm:$0xf]
    %v514 = vld [vmem:[#allocation10 + $0x48] sm:$0xff]
    %v515 = vld [vmem:[#allocation10 + $0x50] sm:$0xf]
    %v516 = vld [vmem:[#allocation10 + $0x54] sm:$0xff]
    %v517 = vld [vmem:[#allocation10 + $0x5c] sm:$0xf]
    %v518 = vld [vmem:[#allocation10 + $0x60] sm:$0xff]
    %v519 = vld [vmem:[#allocation10 + $0x68] sm:$0xf]
    %v520 = vld [vmem:[#allocation10 + $0x6c] sm:$0xff]
    %v521 = vld [vmem:[#allocation10 + $0x74] sm:$0xf]
    %v522 = vld [vmem:[#allocation10 + $0x78] sm:$0xff]
    %v523 = vld [vmem:[#allocation10 + $0x80] sm:$0xf]
    %v524 = vld [vmem:[#allocation10 + $0x84] sm:$0xff]
    %v525 = vld [vmem:[#allocation10 + $0x8c] sm:$0xf]
    %v526 = vld [vmem:[#allocation10 + $0x90] sm:$0xff]
    %v527 = vld [vmem:[#allocation10 + $0x98] sm:$0xf]
    %v528 = vld [vmem:[#allocation10 + $0x9c] sm:$0xff]
    %v529 = vld [vmem:[#allocation10 + $0xa4] sm:$0xf]
    %v530 = vld [vmem:[#allocation10 + $0xa8] sm:$0xff]
    %v531 = vld [vmem:[#allocation10 + $0xb0] sm:$0xf]
    %v532 = vld [vmem:[#allocation10 + $0xb4] sm:$0xff]
    %v533 = vld [vmem:[#allocation10 + $0xbc] sm:$0xf]
    %v534 = vld [vmem:[#allocation10 + $0xc0] sm:$0xff]
    %v535 = vld [vmem:[#allocation10 + $0xc8] sm:$0xf]
    %v536 = vld [vmem:[#allocation10 + $0xcc] sm:$0xff]
    %v537 = vld [vmem:[#allocation10 + $0xd4] sm:$0xf]
    %v538 = vld [vmem:[#allocation10 + $0xd8] sm:$0xff]
    %v539 = vld [vmem:[#allocation10 + $0xe0] sm:$0xf]
    %v540 = vld [vmem:[#allocation10 + $0xe4] sm:$0xff]
    %v541 = vld [vmem:[#allocation10 + $0xec] sm:$0xf]
    %v542 = vld [vmem:[#allocation10 + $0xf0] sm:$0xff]
    %v543 = vld [vmem:[#allocation10 + $0xf8] sm:$0xf]
    %v544 = vld [vmem:[#allocation10 + $0xfc] sm:$0xff]
    %v545 = vld [vmem:[#allocation10 + $0x104] sm:$0xf]
    %v546 = vld [vmem:[#allocation10 + $0x108] sm:$0xff]
    %v547 = vld [vmem:[#allocation10 + $0x110] sm:$0xf]
    %v548 = vld [vmem:[#allocation10 + $0x114] sm:$0xff]
    %v549 = vld [vmem:[#allocation10 + $0x11c] sm:$0xf]
    %v550 = vld [vmem:[#allocation10 + $0x120] sm:$0xff]
    %v551 = vld [vmem:[#allocation10 + $0x128] sm:$0xf]
    %v552 = vld [vmem:[#allocation10 + $0x12c] sm:$0xff]
    %v553 = vld [vmem:[#allocation10 + $0x134] sm:$0xf]
    %v554 = vld [vmem:[#allocation10 + $0x138] sm:$0xff]
    %v555 = vld [vmem:[#allocation10 + $0x140] sm:$0xf]
    %v556 = vld [vmem:[#allocation10 + $0x144] sm:$0xff]
    %v557 = vld [vmem:[#allocation10 + $0x14c] sm:$0xf]
    %v558 = vld [vmem:[#allocation10 + $0x150] sm:$0xff]
    %v559 = vld [vmem:[#allocation10 + $0x158] sm:$0xf]
    %v560 = vld [vmem:[#allocation10 + $0x15c] sm:$0xff]
    %v561 = vld [vmem:[#allocation10 + $0x164] sm:$0xf]
    %v562 = vld [vmem:[#allocation10 + $0x168] sm:$0xff]
    %v563 = vld [vmem:[#allocation10 + $0x170] sm:$0xf]
    %v564 = vld [vmem:[#allocation10 + $0x174] sm:$0xff]
    %v565 = vld [vmem:[#allocation10 + $0x17c] sm:$0xf]
    %v566 = vld [vmem:[#allocation10 + $0x180] sm:$0xff]
    %v567 = vld [vmem:[#allocation10 + $0x188] sm:$0xf]
    %v568 = vld [vmem:[#allocation10 + $0x18c] sm:$0xff]
    %v569 = vld [vmem:[#allocation10 + $0x194] sm:$0xf]
    %v570 = vld [vmem:[#allocation10 + $0x198] sm:$0xff]
    %v571 = vld [vmem:[#allocation10 + $0x1a0] sm:$0xf]
    %v572 = vld [vmem:[#allocation10 + $0x1a4] sm:$0xff]
    %v573 = vld [vmem:[#allocation10 + $0x1ac] sm:$0xf]
    %v574 = vld [vmem:[#allocation10 + $0x1b0] sm:$0xff]
    %v575 = vld [vmem:[#allocation10 + $0x1b8] sm:$0xf]
    %v576 = vld [vmem:[#allocation10 + $0x1bc] sm:$0xff]
    %v577 = vld [vmem:[#allocation10 + $0x1c4] sm:$0xf]
    %v578 = vld [vmem:[#allocation10 + $0x1c8] sm:$0xff]
    %v579 = vld [vmem:[#allocation10 + $0x1d0] sm:$0xf]
    %v580 = vld [vmem:[#allocation10 + $0x1d4] sm:$0xff]
    %v581 = vld [vmem:[#allocation10 + $0x1dc] sm:$0xf]
    %v582 = vld [vmem:[#allocation10 + $0x1e0] sm:$0xff]
    %v583 = vld [vmem:[#allocation10 + $0x1e8] sm:$0xf]
    %v584 = vld [vmem:[#allocation10 + $0x1ec] sm:$0xff]
    %v585 = vld [vmem:[#allocation10 + $0x1f4] sm:$0xf]
    %v586 = vld [vmem:[#allocation10 + $0x1f8] sm:$0xff]
    %v587 = vld [vmem:[#allocation10 + $0x200] sm:$0xf]
    %v588 = vld [vmem:[#allocation10 + $0x204] sm:$0xff]
    %v589 = vld [vmem:[#allocation10 + $0x20c] sm:$0xf]
    %v590 = vld [vmem:[#allocation10 + $0x210] sm:$0xff]
    %v591 = vld [vmem:[#allocation10 + $0x218] sm:$0xf]
    %v592 = vld [vmem:[#allocation10 + $0x21c] sm:$0xff]
    %v593 = vld [vmem:[#allocation10 + $0x224] sm:$0xf]
    %v594 = vld [vmem:[#allocation10 + $0x228] sm:$0xff]
    %v595 = vld [vmem:[#allocation10 + $0x230] sm:$0xf]
    %v596 = vld [vmem:[#allocation10 + $0x234] sm:$0xff]
    %v597 = vld [vmem:[#allocation10 + $0x23c] sm:$0xf]
    %v598 = vld [vmem:[#allocation10 + $0x240] sm:$0xff]
    %v599 = vld [vmem:[#allocation10 + $0x248] sm:$0xf]
    %v600 = vld [vmem:[#allocation10 + $0x24c] sm:$0xff]
    %v601 = vld [vmem:[#allocation10 + $0x254] sm:$0xf]
    %v602 = vld [vmem:[#allocation10 + $0x258] sm:$0xff]
    %v603 = vld [vmem:[#allocation10 + $0x260] sm:$0xf]
    %v604 = vld [vmem:[#allocation10 + $0x264] sm:$0xff]
    %v605 = vld [vmem:[#allocation10 + $0x26c] sm:$0xf]
    %v606 = vld [vmem:[#allocation10 + $0x270] sm:$0xff]
    %v607 = vld [vmem:[#allocation10 + $0x278] sm:$0xf]
    %v608 = vld [vmem:[#allocation10 + $0x27c] sm:$0xff]
    %v609 = vld [vmem:[#allocation10 + $0x284] sm:$0xf]
    %v610 = vld [vmem:[#allocation10 + $0x288] sm:$0xff]
    %v611 = vld [vmem:[#allocation10 + $0x290] sm:$0xf]
    %v612 = vld [vmem:[#allocation10 + $0x294] sm:$0xff]
    %v613 = vld [vmem:[#allocation10 + $0x29c] sm:$0xf]
    %v614 = vld [vmem:[#allocation10 + $0x2a0] sm:$0xff]
    %v615 = vld [vmem:[#allocation10 + $0x2a8] sm:$0xf]
    %v616 = vld [vmem:[#allocation10 + $0x2ac] sm:$0xff]
    %v617 = vld [vmem:[#allocation10 + $0x2b4] sm:$0xf]
    %v618 = vld [vmem:[#allocation10 + $0x2b8] sm:$0xff]
    %v619 = vld [vmem:[#allocation10 + $0x2c0] sm:$0xf]
    %v620 = vld [vmem:[#allocation10 + $0x2c4] sm:$0xff]
    %v621 = vld [vmem:[#allocation10 + $0x2cc] sm:$0xf]
    %v622 = vld [vmem:[#allocation10 + $0x2d0] sm:$0xff]
    %v623 = vld [vmem:[#allocation10 + $0x2d8] sm:$0xf]
    %v624 = vld [vmem:[#allocation10 + $0x2dc] sm:$0xff]
    %v625 = vld [vmem:[#allocation10 + $0x2e4] sm:$0xf]
    %v626 = vld [vmem:[#allocation10 + $0x2e8] sm:$0xff]
    %v627 = vld [vmem:[#allocation10 + $0x2f0] sm:$0xf]
    %v628 = vld [vmem:[#allocation10 + $0x2f4] sm:$0xff]
    %v629 = vld [vmem:[#allocation10 + $0x2fc] sm:$0xf]
    %v630 = vld [vmem:[%s6] sm:$0x7]
    %v632 = vlaneseq
    %v633 = vshrl.u32 %v632, 7
    %v634 = vsub.s32 0, %v633
    %v635 = vrot.slane %v630, %v634
    %v636 = vlaneseq
    %v637 = vshrl.u32 %v636, 7
    %v638 = vsub.s32 1, %v637
    %v639 = vrot.slane %v630, %v638
    %v640 = vlaneseq
    %v641 = vshrl.u32 %v640, 7
    %v642 = vsub.s32 2, %v641
    %v643 = vrot.slane %v630, %v642
    %v775 = vunpack.c.l.b16 %v502
    %v776 = vunpack.c.h.b16 %v502
    %v777 = vunpack.c.l.b16 %v503
    %v778 = vunpack.c.l.b16 %v504
    %v779 = vunpack.c.h.b16 %v504
    %v780 = vunpack.c.l.b16 %v505
    %v781 = vunpack.c.l.b16 %v506
    %v782 = vunpack.c.h.b16 %v506
    %v783 = vunpack.c.l.b16 %v507
    %v784 = vunpack.c.l.b16 %v508
    %v785 = vunpack.c.h.b16 %v508
    %v786 = vunpack.c.l.b16 %v509
    %v787 = vunpack.c.l.b16 %v510
    %v788 = vunpack.c.h.b16 %v510
    %v789 = vunpack.c.l.b16 %v511
    %v790 = vunpack.c.l.b16 %v512
    %v791 = vunpack.c.h.b16 %v512
    %v792 = vunpack.c.l.b16 %v513
    %v793 = vunpack.c.l.b16 %v514
    %v794 = vunpack.c.h.b16 %v514
    %v795 = vunpack.c.l.b16 %v515
    %v796 = vunpack.c.l.b16 %v516
    %v797 = vunpack.c.h.b16 %v516
    %v798 = vunpack.c.l.b16 %v517
    %v799 = vunpack.c.l.b16 %v518
    %v800 = vunpack.c.h.b16 %v518
    %v801 = vunpack.c.l.b16 %v519
    %v802 = vunpack.c.l.b16 %v520
    %v803 = vunpack.c.h.b16 %v520
    %v804 = vunpack.c.l.b16 %v521
    %v805 = vunpack.c.l.b16 %v522
    %v806 = vunpack.c.h.b16 %v522
    %v807 = vunpack.c.l.b16 %v523
    %v808 = vunpack.c.l.b16 %v524
    %v809 = vunpack.c.h.b16 %v524
    %v810 = vunpack.c.l.b16 %v525
    %v811 = vunpack.c.l.b16 %v526
    %v812 = vunpack.c.h.b16 %v526
    %v813 = vunpack.c.l.b16 %v527
    %v814 = vunpack.c.l.b16 %v528
    %v815 = vunpack.c.h.b16 %v528
    %v816 = vunpack.c.l.b16 %v529
    %v817 = vunpack.c.l.b16 %v530
    %v818 = vunpack.c.h.b16 %v530
    %v819 = vunpack.c.l.b16 %v531
    %v820 = vunpack.c.l.b16 %v532
    %v821 = vunpack.c.h.b16 %v532
    %v822 = vunpack.c.l.b16 %v533
    %v823 = vunpack.c.l.b16 %v534
    %v824 = vunpack.c.h.b16 %v534
    %v825 = vunpack.c.l.b16 %v535
    %v826 = vunpack.c.l.b16 %v536
    %v827 = vunpack.c.h.b16 %v536
    %v828 = vunpack.c.l.b16 %v537
    %v829 = vunpack.c.l.b16 %v538
    %v830 = vunpack.c.h.b16 %v538
    %v831 = vunpack.c.l.b16 %v539
    %v832 = vunpack.c.l.b16 %v540
    %v833 = vunpack.c.h.b16 %v540
    %v834 = vunpack.c.l.b16 %v541
    %v835 = vunpack.c.l.b16 %v542
    %v836 = vunpack.c.h.b16 %v542
    %v837 = vunpack.c.l.b16 %v543
    %v838 = vunpack.c.l.b16 %v544
    %v839 = vunpack.c.h.b16 %v544
    %v840 = vunpack.c.l.b16 %v545
    %v841 = vunpack.c.l.b16 %v546
    %v842 = vunpack.c.h.b16 %v546
    %v843 = vunpack.c.l.b16 %v547
    %v844 = vunpack.c.l.b16 %v548
    %v845 = vunpack.c.h.b16 %v548
    %v846 = vunpack.c.l.b16 %v549
    %v847 = vunpack.c.l.b16 %v550
    %v848 = vunpack.c.h.b16 %v550
    %v849 = vunpack.c.l.b16 %v551
    %v850 = vunpack.c.l.b16 %v552
    %v851 = vunpack.c.h.b16 %v552
    %v852 = vunpack.c.l.b16 %v553
    %v853 = vunpack.c.l.b16 %v554
    %v854 = vunpack.c.h.b16 %v554
    %v855 = vunpack.c.l.b16 %v555
    %v856 = vunpack.c.l.b16 %v556
    %v857 = vunpack.c.h.b16 %v556
    %v858 = vunpack.c.l.b16 %v557
    %v859 = vunpack.c.l.b16 %v558
    %v860 = vunpack.c.h.b16 %v558
    %v861 = vunpack.c.l.b16 %v559
    %v862 = vunpack.c.l.b16 %v560
    %v863 = vunpack.c.h.b16 %v560
    %v864 = vunpack.c.l.b16 %v561
    %v865 = vunpack.c.l.b16 %v562
    %v866 = vunpack.c.h.b16 %v562
    %v867 = vunpack.c.l.b16 %v563
    %v868 = vunpack.c.l.b16 %v564
    %v869 = vunpack.c.h.b16 %v564
    %v870 = vunpack.c.l.b16 %v565
    %v871 = vunpack.c.l.b16 %v566
    %v872 = vunpack.c.h.b16 %v566
    %v873 = vunpack.c.l.b16 %v567
    %v874 = vunpack.c.l.b16 %v568
    %v875 = vunpack.c.h.b16 %v568
    %v876 = vunpack.c.l.b16 %v569
    %v877 = vunpack.c.l.b16 %v570
    %v878 = vunpack.c.h.b16 %v570
    %v879 = vunpack.c.l.b16 %v571
    %v880 = vunpack.c.l.b16 %v572
    %v881 = vunpack.c.h.b16 %v572
    %v882 = vunpack.c.l.b16 %v573
    %v883 = vunpack.c.l.b16 %v574
    %v884 = vunpack.c.h.b16 %v574
    %v885 = vunpack.c.l.b16 %v575
    %v886 = vunpack.c.l.b16 %v576
    %v887 = vunpack.c.h.b16 %v576
    %v888 = vunpack.c.l.b16 %v577
    %v889 = vunpack.c.l.b16 %v578
    %v890 = vunpack.c.h.b16 %v578
    %v891 = vunpack.c.l.b16 %v579
    %v892 = vunpack.c.l.b16 %v580
    %v893 = vunpack.c.h.b16 %v580
    %v894 = vunpack.c.l.b16 %v581
    %v895 = vunpack.c.l.b16 %v582
    %v896 = vunpack.c.h.b16 %v582
    %v897 = vunpack.c.l.b16 %v583
    %v898 = vunpack.c.l.b16 %v584
    %v899 = vunpack.c.h.b16 %v584
    %v900 = vunpack.c.l.b16 %v585
    %v901 = vunpack.c.l.b16 %v586
    %v902 = vunpack.c.h.b16 %v586
    %v903 = vunpack.c.l.b16 %v587
    %v904 = vunpack.c.l.b16 %v588
    %v905 = vunpack.c.h.b16 %v588
    %v906 = vunpack.c.l.b16 %v589
    %v907 = vunpack.c.l.b16 %v590
    %v908 = vunpack.c.h.b16 %v590
    %v909 = vunpack.c.l.b16 %v591
    %v910 = vunpack.c.l.b16 %v592
    %v911 = vunpack.c.h.b16 %v592
    %v912 = vunpack.c.l.b16 %v593
    %v913 = vunpack.c.l.b16 %v594
    %v914 = vunpack.c.h.b16 %v594
    %v915 = vunpack.c.l.b16 %v595
    %v916 = vunpack.c.l.b16 %v596
    %v917 = vunpack.c.h.b16 %v596
    %v918 = vunpack.c.l.b16 %v597
    %v919 = vunpack.c.l.b16 %v598
    %v920 = vunpack.c.h.b16 %v598
    %v921 = vunpack.c.l.b16 %v599
    %v922 = vunpack.c.l.b16 %v600
    %v923 = vunpack.c.h.b16 %v600
    %v924 = vunpack.c.l.b16 %v601
    %v925 = vunpack.c.l.b16 %v602
    %v926 = vunpack.c.h.b16 %v602
    %v927 = vunpack.c.l.b16 %v603
    %v928 = vunpack.c.l.b16 %v604
    %v929 = vunpack.c.h.b16 %v604
    %v930 = vunpack.c.l.b16 %v605
    %v931 = vunpack.c.l.b16 %v606
    %v932 = vunpack.c.h.b16 %v606
    %v933 = vunpack.c.l.b16 %v607
    %v934 = vunpack.c.l.b16 %v608
    %v935 = vunpack.c.h.b16 %v608
    %v936 = vunpack.c.l.b16 %v609
    %v937 = vunpack.c.l.b16 %v610
    %v938 = vunpack.c.h.b16 %v610
    %v939 = vunpack.c.l.b16 %v611
    %v940 = vunpack.c.l.b16 %v612
    %v941 = vunpack.c.h.b16 %v612
    %v942 = vunpack.c.l.b16 %v613
    %v943 = vunpack.c.l.b16 %v614
    %v944 = vunpack.c.h.b16 %v614
    %v945 = vunpack.c.l.b16 %v615
    %v946 = vunpack.c.l.b16 %v616
    %v947 = vunpack.c.h.b16 %v616
    %v948 = vunpack.c.l.b16 %v617
    %v949 = vunpack.c.l.b16 %v618
    %v950 = vunpack.c.h.b16 %v618
    %v951 = vunpack.c.l.b16 %v619
    %v952 = vunpack.c.l.b16 %v620
    %v953 = vunpack.c.h.b16 %v620
    %v954 = vunpack.c.l.b16 %v621
    %v955 = vunpack.c.l.b16 %v622
    %v956 = vunpack.c.h.b16 %v622
    %v957 = vunpack.c.l.b16 %v623
    %v958 = vunpack.c.l.b16 %v624
    %v959 = vunpack.c.h.b16 %v624
    %v960 = vunpack.c.l.b16 %v625
    %v961 = vunpack.c.l.b16 %v626
    %v962 = vunpack.c.h.b16 %v626
    %v963 = vunpack.c.l.b16 %v627
    %v964 = vunpack.c.l.b16 %v628
    %v965 = vunpack.c.h.b16 %v628
    %v966 = vunpack.c.l.b16 %v629
    %v967 = vpack.c.b16 %v778, %v775
    %v968 = vpack.c.b16 %v779, %v776
    %v969 = vpack.c.b16 %v780, %v777
    %v970 = vpack.c.b16 %v784, %v781
    %v971 = vpack.c.b16 %v785, %v782
    %v972 = vpack.c.b16 %v786, %v783
    %v973 = vpack.c.b16 %v790, %v787
    %v974 = vpack.c.b16 %v791, %v788
    %v975 = vpack.c.b16 %v792, %v789
    %v976 = vpack.c.b16 %v796, %v793
    %v977 = vpack.c.b16 %v797, %v794
    %v978 = vpack.c.b16 %v798, %v795
    %v979 = vpack.c.b16 %v802, %v799
    %v980 = vpack.c.b16 %v803, %v800
    %v981 = vpack.c.b16 %v804, %v801
    %v982 = vpack.c.b16 %v808, %v805
    %v983 = vpack.c.b16 %v809, %v806
    %v984 = vpack.c.b16 %v810, %v807
    %v985 = vpack.c.b16 %v814, %v811
    %v986 = vpack.c.b16 %v815, %v812
    %v987 = vpack.c.b16 %v816, %v813
    %v988 = vpack.c.b16 %v820, %v817
    %v989 = vpack.c.b16 %v821, %v818
    %v990 = vpack.c.b16 %v822, %v819
    %v991 = vpack.c.b16 %v826, %v823
    %v992 = vpack.c.b16 %v827, %v824
    %v993 = vpack.c.b16 %v828, %v825
    %v994 = vpack.c.b16 %v832, %v829
    %v995 = vpack.c.b16 %v833, %v830
    %v996 = vpack.c.b16 %v834, %v831
    %v997 = vpack.c.b16 %v838, %v835
    %v998 = vpack.c.b16 %v839, %v836
    %v999 = vpack.c.b16 %v840, %v837
    %v1000 = vpack.c.b16 %v844, %v841
    %v1001 = vpack.c.b16 %v845, %v842
    %v1002 = vpack.c.b16 %v846, %v843
    %v1003 = vpack.c.b16 %v850, %v847
    %v1004 = vpack.c.b16 %v851, %v848
    %v1005 = vpack.c.b16 %v852, %v849
    %v1006 = vpack.c.b16 %v856, %v853
    %v1007 = vpack.c.b16 %v857, %v854
    %v1008 = vpack.c.b16 %v858, %v855
    %v1009 = vpack.c.b16 %v862, %v859
    %v1010 = vpack.c.b16 %v863, %v860
    %v1011 = vpack.c.b16 %v864, %v861
    %v1012 = vpack.c.b16 %v868, %v865
    %v1013 = vpack.c.b16 %v869, %v866
    %v1014 = vpack.c.b16 %v870, %v867
    %v1015 = vpack.c.b16 %v874, %v871
    %v1016 = vpack.c.b16 %v875, %v872
    %v1017 = vpack.c.b16 %v876, %v873
    %v1018 = vpack.c.b16 %v880, %v877
    %v1019 = vpack.c.b16 %v881, %v878
    %v1020 = vpack.c.b16 %v882, %v879
    %v1021 = vpack.c.b16 %v886, %v883
    %v1022 = vpack.c.b16 %v887, %v884
    %v1023 = vpack.c.b16 %v888, %v885
    %v1024 = vpack.c.b16 %v892, %v889
    %v1025 = vpack.c.b16 %v893, %v890
    %v1026 = vpack.c.b16 %v894, %v891
    %v1027 = vpack.c.b16 %v898, %v895
    %v1028 = vpack.c.b16 %v899, %v896
    %v1029 = vpack.c.b16 %v900, %v897
    %v1030 = vpack.c.b16 %v904, %v901
    %v1031 = vpack.c.b16 %v905, %v902
    %v1032 = vpack.c.b16 %v906, %v903
    %v1033 = vpack.c.b16 %v910, %v907
    %v1034 = vpack.c.b16 %v911, %v908
    %v1035 = vpack.c.b16 %v912, %v909
    %v1036 = vpack.c.b16 %v916, %v913
    %v1037 = vpack.c.b16 %v917, %v914
    %v1038 = vpack.c.b16 %v918, %v915
    %v1039 = vpack.c.b16 %v922, %v919
    %v1040 = vpack.c.b16 %v923, %v920
    %v1041 = vpack.c.b16 %v924, %v921
    %v1042 = vpack.c.b16 %v928, %v925
    %v1043 = vpack.c.b16 %v929, %v926
    %v1044 = vpack.c.b16 %v930, %v927
    %v1045 = vpack.c.b16 %v934, %v931
    %v1046 = vpack.c.b16 %v935, %v932
    %v1047 = vpack.c.b16 %v936, %v933
    %v1048 = vpack.c.b16 %v940, %v937
    %v1049 = vpack.c.b16 %v941, %v938
    %v1050 = vpack.c.b16 %v942, %v939
    %v1051 = vpack.c.b16 %v946, %v943
    %v1052 = vpack.c.b16 %v947, %v944
    %v1053 = vpack.c.b16 %v948, %v945
    %v1054 = vpack.c.b16 %v952, %v949
    %v1055 = vpack.c.b16 %v953, %v950
    %v1056 = vpack.c.b16 %v954, %v951
    %v1057 = vpack.c.b16 %v958, %v955
    %v1058 = vpack.c.b16 %v959, %v956
    %v1059 = vpack.c.b16 %v960, %v957
    %v1060 = vpack.c.b16 %v964, %v961
    %v1061 = vpack.c.b16 %v965, %v962
    %v1062 = vpack.c.b16 %v966, %v963
    %1159 = vmatprep.subr.bf16.mxu0 %v989
    %1160 = vmatpush1.bf16.msra.mxu0 %v988
    %1161 = vmatprep.subr.bf16.mxu0 %v986
    %1162 = vmatpush1.bf16.msra.mxu0 %v985
    %1163 = vmatprep.subr.bf16.mxu0 %v983
    %1164 = vmatpush1.bf16.msra.mxu0 %v982
    %1165 = vmatprep.subr.bf16.mxu0 %v980
    %1166 = vmatpush1.bf16.msra.mxu0 %v979
    %1167 = vmatprep.subr.bf16.mxu0 %v977
    %1168 = vmatpush1.bf16.msra.mxu0 %v976
    %1169 = vmatprep.subr.bf16.mxu0 %v974
    %1170 = vmatpush1.bf16.msra.mxu0 %v973
    %1171 = vmatprep.subr.bf16.mxu0 %v971
    %1172 = vmatpush1.bf16.msra.mxu0 %v970
    %1173 = vmatprep.subr.bf16.mxu0 %v968
    %1174 = vmatpush1.bf16.msra.mxu0 %v967
    %1175 = vmatprep.subr.bf16.mxu0 %v1013
    %1176 = vmatpush2.bf16.msra.mxu0 %v1012
    %1177 = vmatprep.subr.bf16.mxu0 %v1010
    %1178 = vmatpush2.bf16.msra.mxu0 %v1009
    %1179 = vmatprep.subr.bf16.mxu0 %v1007
    %1180 = vmatpush2.bf16.msra.mxu0 %v1006
    %1181 = vmatprep.subr.bf16.mxu0 %v1004
    %1182 = vmatpush2.bf16.msra.mxu0 %v1003
    %1183 = vmatprep.subr.bf16.mxu0 %v1001
    %1184 = vmatpush2.bf16.msra.mxu0 %v1000
    %1185 = vmatprep.subr.bf16.mxu0 %v998
    %1186 = vmatpush2.bf16.msra.mxu0 %v997
    %1187 = vmatprep.subr.bf16.mxu0 %v995
    %1188 = vmatpush2.bf16.msra.mxu0 %v994
    %1189 = vmatprep.subr.bf16.mxu0 %v992
    %1190 = vmatpush2.bf16.msra.mxu0 %v991
    %1191 = vmatprep.mubr.bf16.mxu0 %v499
    %1192 = vmatmul.mubr.bf16.gmra.mxu0 %v498
    %v1193 = vpop.f32.mrf.mxu0
    %v1194 = vadd.f32 %v635, %v1193
    %v1195 = vpop.f32.mrf.mxu0
    %v1196 = vadd.f32 %v639, %v1195
    %v1197 = vpop.f32.mrf.mxu0
    %v1198 = vpop.f32.mrf.mxu0
    %1199 = vdwg.mxu0
    %1200 = vmatprep.subr.bf16.mxu0 %v1037
    %1201 = vmatpush1.bf16.msra.mxu0 %v1036
    %1202 = vmatprep.subr.bf16.mxu0 %v1034
    %1203 = vmatpush1.bf16.msra.mxu0 %v1033
    %1204 = vmatprep.subr.bf16.mxu0 %v1031
    %1205 = vmatpush1.bf16.msra.mxu0 %v1030
    %1206 = vmatprep.subr.bf16.mxu0 %v1028
    %1207 = vmatpush1.bf16.msra.mxu0 %v1027
    %1208 = vmatprep.subr.bf16.mxu0 %v1025
    %1209 = vmatpush1.bf16.msra.mxu0 %v1024
    %1210 = vmatprep.subr.bf16.mxu0 %v1022
    %1211 = vmatpush1.bf16.msra.mxu0 %v1021
    %1212 = vmatprep.subr.bf16.mxu0 %v1019
    %1213 = vmatpush1.bf16.msra.mxu0 %v1018
    %1214 = vmatprep.subr.bf16.mxu0 %v1016
    %1215 = vmatpush1.bf16.msra.mxu0 %v1015
    %1216 = vmatprep.subr.bf16.mxu0 %v1061
    %1217 = vmatpush2.bf16.msra.mxu0 %v1060
    %1218 = vmatprep.subr.bf16.mxu0 %v1058
    %1219 = vmatpush2.bf16.msra.mxu0 %v1057
    %1220 = vmatprep.subr.bf16.mxu0 %v1055
    %1221 = vmatpush2.bf16.msra.mxu0 %v1054
    %1222 = vmatprep.subr.bf16.mxu0 %v1052
    %1223 = vmatpush2.bf16.msra.mxu0 %v1051
    %1224 = vmatprep.subr.bf16.mxu0 %v1049
    %1225 = vmatpush2.bf16.msra.mxu0 %v1048
    %1226 = vmatprep.subr.bf16.mxu0 %v1046
    %1227 = vmatpush2.bf16.msra.mxu0 %v1045
    %1228 = vmatprep.subr.bf16.mxu0 %v1043
    %1229 = vmatpush2.bf16.msra.mxu0 %v1042
    %1230 = vmatprep.subr.bf16.mxu0 %v1040
    %1231 = vmatpush2.bf16.msra.mxu0 %v1039
    %1232 = vmatprep.mubr.bf16.mxu0 %v501
    %1233 = vmatmul.mubr.bf16.gmra.mxu0 %v500
    %v1234 = vpop.f32.mrf.mxu0
    %v1235 = vadd.f32 %v1194, %v1234
    %v1236 = vpop.f32.mrf.mxu0
    %v1237 = vadd.f32 %v1196, %v1236
    %v1238 = vpop.f32.mrf.mxu0
    %v1239 = vpop.f32.mrf.mxu0
    %1240 = vdwg.mxu0
    %1241 = vmatprep.subr.bf16.mxu0 0
    %1242 = vmatpush1.bf16.msra.mxu0 %v990
    %1243 = vmatprep.subr.bf16.mxu0 0
    %1244 = vmatpush1.bf16.msra.mxu0 %v987
    %1245 = vmatprep.subr.bf16.mxu0 0
    %1246 = vmatpush1.bf16.msra.mxu0 %v984
    %1247 = vmatprep.subr.bf16.mxu0 0
    %1248 = vmatpush1.bf16.msra.mxu0 %v981
    %1249 = vmatprep.subr.bf16.mxu0 0
    %1250 = vmatpush1.bf16.msra.mxu0 %v978
    %1251 = vmatprep.subr.bf16.mxu0 0
    %1252 = vmatpush1.bf16.msra.mxu0 %v975
    %1253 = vmatprep.subr.bf16.mxu0 0
    %1254 = vmatpush1.bf16.msra.mxu0 %v972
    %1255 = vmatprep.subr.bf16.mxu0 0
    %1256 = vmatpush1.bf16.msra.mxu0 %v969
    %1257 = vmatprep.subr.bf16.mxu0 0
    %1258 = vmatpush2.bf16.msra.mxu0 %v1014
    %1259 = vmatprep.subr.bf16.mxu0 0
    %1260 = vmatpush2.bf16.msra.mxu0 %v1011
    %1261 = vmatprep.subr.bf16.mxu0 0
    %1262 = vmatpush2.bf16.msra.mxu0 %v1008
    %1263 = vmatprep.subr.bf16.mxu0 0
    %1264 = vmatpush2.bf16.msra.mxu0 %v1005
    %1265 = vmatprep.subr.bf16.mxu0 0
    %1266 = vmatpush2.bf16.msra.mxu0 %v1002
    %1267 = vmatprep.subr.bf16.mxu0 0
    %1268 = vmatpush2.bf16.msra.mxu0 %v999
    %1269 = vmatprep.subr.bf16.mxu0 0
    %1270 = vmatpush2.bf16.msra.mxu0 %v996
    %1271 = vmatprep.subr.bf16.mxu0 0
    %1272 = vmatpush2.bf16.msra.mxu0 %v993
    %1273 = vmatprep.mubr.bf16.mxu0 %v499
    %1274 = vmatmul.mubr.bf16.gmra.mxu0 %v498
    %v1275 = vpop.f32.mrf.mxu0
    %v1276 = vadd.f32 %v643, %v1275
    %v1277 = vpop.f32.mrf.mxu0
    %v1278 = vpop.f32.mrf.mxu0
    %v1279 = vpop.f32.mrf.mxu0
    %1280 = vdwg.mxu0
    %1281 = vmatprep.subr.bf16.mxu0 0
    %1282 = vmatpush1.bf16.msra.mxu0 %v1038
    %1283 = vmatprep.subr.bf16.mxu0 0
    %1284 = vmatpush1.bf16.msra.mxu0 %v1035
    %1285 = vmatprep.subr.bf16.mxu0 0
    %1286 = vmatpush1.bf16.msra.mxu0 %v1032
    %1287 = vmatprep.subr.bf16.mxu0 0
    %1288 = vmatpush1.bf16.msra.mxu0 %v1029
    %1289 = vmatprep.subr.bf16.mxu0 0
    %1290 = vmatpush1.bf16.msra.mxu0 %v1026
    %1291 = vmatprep.subr.bf16.mxu0 0
    %1292 = vmatpush1.bf16.msra.mxu0 %v1023
    %1293 = vmatprep.subr.bf16.mxu0 0
    %1294 = vmatpush1.bf16.msra.mxu0 %v1020
    %1295 = vmatprep.subr.bf16.mxu0 0
    %1296 = vmatpush1.bf16.msra.mxu0 %v1017
    %1297 = vmatprep.subr.bf16.mxu0 0
    %1298 = vmatpush2.bf16.msra.mxu0 %v1062
    %1299 = vmatprep.subr.bf16.mxu0 0
    %1300 = vmatpush2.bf16.msra.mxu0 %v1059
    %1301 = vmatprep.subr.bf16.mxu0 0
    %1302 = vmatpush2.bf16.msra.mxu0 %v1056
    %1303 = vmatprep.subr.bf16.mxu0 0
    %1304 = vmatpush2.bf16.msra.mxu0 %v1053
    %1305 = vmatprep.subr.bf16.mxu0 0
    %1306 = vmatpush2.bf16.msra.mxu0 %v1050
    %1307 = vmatprep.subr.bf16.mxu0 0
    %1308 = vmatpush2.bf16.msra.mxu0 %v1047
    %1309 = vmatprep.subr.bf16.mxu0 0
    %1310 = vmatpush2.bf16.msra.mxu0 %v1044
    %1311 = vmatprep.subr.bf16.mxu0 0
    %1312 = vmatpush2.bf16.msra.mxu0 %v1041
    %1313 = vmatprep.mubr.bf16.mxu0 %v501
    %1314 = vmatmul.mubr.bf16.gmra.mxu0 %v500
    %v1315 = vpop.f32.mrf.mxu0
    %v1316 = vadd.f32 %v1276, %v1315
    %v1317 = vpop.f32.mrf.mxu0
    %v1318 = vpop.f32.mrf.mxu0
    %v1319 = vpop.f32.mrf.mxu0
    %1320 = vdwg.mxu0
    %v1321 = vld [vmem:[%s7] sm:$0x7]
    %v1322 = vld [vmem:[%s8] sm:$0x7]
    %v1323 = vadd.f32 %v1235, %v1237
    %v1324 = vadd.f32 %v1323, %v1316
    %1325 = vadd.xlane.f32.xlu0 %v1324
    %v1326 = vpop.xlane.xlu0 %1325
    %v1327 = vmul.f32 %v1326, 0.0033333334
    %v1328 = vmul.f32 %v1235, %v1235
    %v1329 = vmul.f32 %v1237, %v1237
    %v1330 = vmul.f32 %v1316, %v1316
    %v1331 = vadd.f32 %v1328, %v1329
    %v1332 = vadd.f32 %v1331, %v1330
    %1333 = vadd.xlane.f32.xlu0 %v1332
    %v1334 = vpop.xlane.xlu0 %1333
    %v1335 = vmul.f32 %v1334, 0.0033333334
    %v1336 = vmul.f32 %v1327, %v1327
    %v1337 = vsub.f32 %v1335, %v1336
    %v1338 = vmax.f32 %v1337, 0.0
    %v1339 = vsub.f32 %v1235, %v1327
    %v1340 = vsub.f32 %v1237, %v1327
    %v1341 = vsub.f32 %v1316, %v1327
    %v1342 = vadd.f32 %v1338, 1e-05
    %v1343 = vrsqrt.pop %v1342
    %v1344 = vmul.f32 %v1339, %v1343
    %v1345 = vmul.f32 %v1340, %v1343
    %v1346 = vmul.f32 %v1341, %v1343
    %v1348 = vlaneseq
    %v1349 = vshrl.u32 %v1348, 7
    %v1350 = vsub.s32 0, %v1349
    %v1351 = vrot.slane %v1321, %v1350
    %v1352 = vlaneseq
    %v1353 = vshrl.u32 %v1352, 7
    %v1354 = vsub.s32 1, %v1353
    %v1355 = vrot.slane %v1321, %v1354
    %v1356 = vlaneseq
    %v1357 = vshrl.u32 %v1356, 7
    %v1358 = vsub.s32 2, %v1357
    %v1359 = vrot.slane %v1321, %v1358
    %v1363 = vmul.f32 %v1344, %v1351
    %v1364 = vmul.f32 %v1345, %v1355
    %v1365 = vmul.f32 %v1346, %v1359
    %v1367 = vlaneseq
    %v1368 = vshrl.u32 %v1367, 7
    %v1369 = vsub.s32 0, %v1368
    %v1370 = vrot.slane %v1322, %v1369
    %v1371 = vlaneseq
    %v1372 = vshrl.u32 %v1371, 7
    %v1373 = vsub.s32 1, %v1372
    %v1374 = vrot.slane %v1322, %v1373
    %v1375 = vlaneseq
    %v1376 = vshrl.u32 %v1375, 7
    %v1377 = vsub.s32 2, %v1376
    %v1378 = vrot.slane %v1322, %v1377
    %v1382 = vadd.f32 %v1363, %v1370
    %v1383 = vadd.f32 %v1364, %v1374
    %v1384 = vadd.f32 %v1365, %v1378
    %v1385 = vpack.c.bf16 %v1382, %v1382
    %v1386 = vpack.c.bf16 %v1383, %v1383
    %v1387 = vpack.c.bf16 %v1384, %v1384
    %v1388 = vld [vmem:[#allocation11] sm:$0xf]
    %v1389 = vld [vmem:[#allocation11 + $0x4] sm:$0xf]
    %v1390 = vld [vmem:[#allocation11 + $0x8] sm:$0xf]
    %v1391 = vld [vmem:[#allocation11 + $0xc] sm:$0xf]
    %v1392 = vld [vmem:[#allocation11 + $0x10] sm:$0xf]
    %v1393 = vld [vmem:[#allocation11 + $0x14] sm:$0xf]
    %v1394 = vld [vmem:[#allocation11 + $0x18] sm:$0xf]
    %v1395 = vld [vmem:[#allocation11 + $0x1c] sm:$0xf]
    %v1396 = vld [vmem:[#allocation11 + $0x20] sm:$0xf]
    %v1397 = vld [vmem:[#allocation11 + $0x24] sm:$0xf]
    %v1398 = vld [vmem:[#allocation11 + $0x28] sm:$0xf]
    %v1399 = vld [vmem:[#allocation11 + $0x2c] sm:$0xf]
    %v1400 = vld [vmem:[#allocation11 + $0x30] sm:$0xf]
    %v1401 = vld [vmem:[#allocation11 + $0x34] sm:$0xf]
    %v1402 = vld [vmem:[#allocation11 + $0x38] sm:$0xf]
    %v1403 = vld [vmem:[#allocation11 + $0x3c] sm:$0xf]
    %v1404 = vld [vmem:[#allocation11 + $0x40] sm:$0xf]
    %v1405 = vld [vmem:[#allocation11 + $0x44] sm:$0xf]
    %v1406 = vld [vmem:[#allocation11 + $0x48] sm:$0xf]
    %v1407 = vld [vmem:[#allocation11 + $0x4c] sm:$0xf]
    %v1408 = vld [vmem:[#allocation11 + $0x50] sm:$0xf]
    %v1409 = vld [vmem:[#allocation11 + $0x54] sm:$0xf]
    %v1410 = vld [vmem:[#allocation11 + $0x58] sm:$0xf]
    %v1411 = vld [vmem:[#allocation11 + $0x5c] sm:$0xf]
    %v1412 = vld [vmem:[#allocation11 + $0x60] sm:$0xf]
    %v1413 = vld [vmem:[#allocation11 + $0x64] sm:$0xf]
    %v1414 = vld [vmem:[#allocation11 + $0x68] sm:$0xf]
    %v1415 = vld [vmem:[#allocation11 + $0x6c] sm:$0xf]
    %v1416 = vld [vmem:[#allocation11 + $0x70] sm:$0xf]
    %v1417 = vld [vmem:[#allocation11 + $0x74] sm:$0xf]
    %v1418 = vld [vmem:[#allocation11 + $0x78] sm:$0xf]
    %v1419 = vld [vmem:[#allocation11 + $0x7c] sm:$0xf]
    %v1420 = vld [vmem:[#allocation11 + $0x80] sm:$0xf]
    %v1421 = vld [vmem:[#allocation11 + $0x84] sm:$0xf]
    %v1422 = vld [vmem:[#allocation11 + $0x88] sm:$0xf]
    %v1423 = vld [vmem:[#allocation11 + $0x8c] sm:$0xf]
    %v1424 = vld [vmem:[#allocation11 + $0x90] sm:$0xf]
    %v1425 = vld [vmem:[#allocation11 + $0x94] sm:$0xf]
    %v1426 = vld [vmem:[#allocation11 + $0x98] sm:$0xf]
    %v1427 = vld [vmem:[#allocation11 + $0x9c] sm:$0xf]
    %v1428 = vld [vmem:[#allocation11 + $0xa0] sm:$0xf]
    %v1429 = vld [vmem:[#allocation11 + $0xa4] sm:$0xf]
    %v1430 = vld [vmem:[#allocation11 + $0xa8] sm:$0xf]
    %v1431 = vld [vmem:[#allocation11 + $0xac] sm:$0xf]
    %v1432 = vld [vmem:[#allocation11 + $0xb0] sm:$0xf]
    %v1433 = vld [vmem:[#allocation11 + $0xb4] sm:$0xf]
    %v1434 = vld [vmem:[#allocation11 + $0xb8] sm:$0xf]
    %v1435 = vld [vmem:[#allocation11 + $0xbc] sm:$0xf]
    %v1436 = vld [vmem:[%s10] sm:$0x1]
    %v1438 = vlaneseq
    %v1439 = vshrl.u32 %v1438, 7
    %v1440 = vsub.s32 0, %v1439
    %v1441 = vrot.slane %v1436, %v1440
    %v1491 = vunpack.c.l.b16 %v1388
    %v1492 = vunpack.c.l.b16 %v1389
    %v1493 = vunpack.c.l.b16 %v1390
    %v1494 = vunpack.c.l.b16 %v1391
    %v1495 = vunpack.c.l.b16 %v1392
    %v1496 = vunpack.c.l.b16 %v1393
    %v1497 = vunpack.c.l.b16 %v1394
    %v1498 = vunpack.c.l.b16 %v1395
    %v1499 = vunpack.c.l.b16 %v1396
    %v1500 = vunpack.c.l.b16 %v1397
    %v1501 = vunpack.c.l.b16 %v1398
    %v1502 = vunpack.c.l.b16 %v1399
    %v1503 = vunpack.c.l.b16 %v1400
    %v1504 = vunpack.c.l.b16 %v1401
    %v1505 = vunpack.c.l.b16 %v1402
    %v1506 = vunpack.c.l.b16 %v1403
    %v1507 = vunpack.c.l.b16 %v1404
    %v1508 = vunpack.c.l.b16 %v1405
    %v1509 = vunpack.c.l.b16 %v1406
    %v1510 = vunpack.c.l.b16 %v1407
    %v1511 = vunpack.c.l.b16 %v1408
    %v1512 = vunpack.c.l.b16 %v1409
    %v1513 = vunpack.c.l.b16 %v1410
    %v1514 = vunpack.c.l.b16 %v1411
    %v1515 = vunpack.c.l.b16 %v1412
    %v1516 = vunpack.c.l.b16 %v1413
    %v1517 = vunpack.c.l.b16 %v1414
    %v1518 = vunpack.c.l.b16 %v1415
    %v1519 = vunpack.c.l.b16 %v1416
    %v1520 = vunpack.c.l.b16 %v1417
    %v1521 = vunpack.c.l.b16 %v1418
    %v1522 = vunpack.c.l.b16 %v1419
    %v1523 = vunpack.c.l.b16 %v1420
    %v1524 = vunpack.c.l.b16 %v1421
    %v1525 = vunpack.c.l.b16 %v1422
    %v1526 = vunpack.c.l.b16 %v1423
    %v1527 = vunpack.c.l.b16 %v1424
    %v1528 = vunpack.c.l.b16 %v1425
    %v1529 = vunpack.c.l.b16 %v1426
    %v1530 = vunpack.c.l.b16 %v1427
    %v1531 = vunpack.c.l.b16 %v1428
    %v1532 = vunpack.c.l.b16 %v1429
    %v1533 = vunpack.c.l.b16 %v1430
    %v1534 = vunpack.c.l.b16 %v1431
    %v1535 = vunpack.c.l.b16 %v1432
    %v1536 = vunpack.c.l.b16 %v1433
    %v1537 = vunpack.c.l.b16 %v1434
    %v1538 = vunpack.c.l.b16 %v1435
    %v1539 = vpack.c.b16 %v1492, %v1491
    %v1540 = vpack.c.b16 %v1494, %v1493
    %v1541 = vpack.c.b16 %v1496, %v1495
    %v1542 = vpack.c.b16 %v1498, %v1497
    %v1543 = vpack.c.b16 %v1500, %v1499
    %v1544 = vpack.c.b16 %v1502, %v1501
    %v1545 = vpack.c.b16 %v1504, %v1503
    %v1546 = vpack.c.b16 %v1506, %v1505
    %v1547 = vpack.c.b16 %v1508, %v1507
    %v1548 = vpack.c.b16 %v1510, %v1509
    %v1549 = vpack.c.b16 %v1512, %v1511
    %v1550 = vpack.c.b16 %v1514, %v1513
    %v1551 = vpack.c.b16 %v1516, %v1515
    %v1552 = vpack.c.b16 %v1518, %v1517
    %v1553 = vpack.c.b16 %v1520, %v1519
    %v1554 = vpack.c.b16 %v1522, %v1521
    %v1555 = vpack.c.b16 %v1524, %v1523
    %v1556 = vpack.c.b16 %v1526, %v1525
    %v1557 = vpack.c.b16 %v1528, %v1527
    %v1558 = vpack.c.b16 %v1530, %v1529
    %v1559 = vpack.c.b16 %v1532, %v1531
    %v1560 = vpack.c.b16 %v1534, %v1533
    %v1561 = vpack.c.b16 %v1536, %v1535
    %v1562 = vpack.c.b16 %v1538, %v1537
    %1587 = vmatprep.subr.bf16.mxu0 0
    %1588 = vmatpush1.bf16.msra.mxu0 %v1546
    %1589 = vmatprep.subr.bf16.mxu0 0
    %1590 = vmatpush1.bf16.msra.mxu0 %v1545
    %1591 = vmatprep.subr.bf16.mxu0 0
    %1592 = vmatpush1.bf16.msra.mxu0 %v1544
    %1593 = vmatprep.subr.bf16.mxu0 0
    %1594 = vmatpush1.bf16.msra.mxu0 %v1543
    %1595 = vmatprep.subr.bf16.mxu0 0
    %1596 = vmatpush1.bf16.msra.mxu0 %v1542
    %1597 = vmatprep.subr.bf16.mxu0 0
    %1598 = vmatpush1.bf16.msra.mxu0 %v1541
    %1599 = vmatprep.subr.bf16.mxu0 0
    %1600 = vmatpush1.bf16.msra.mxu0 %v1540
    %1601 = vmatprep.subr.bf16.mxu0 0
    %1602 = vmatpush1.bf16.msra.mxu0 %v1539
    %1603 = vmatprep.subr.bf16.mxu0 0
    %1604 = vmatpush2.bf16.msra.mxu0 %v1554
    %1605 = vmatprep.subr.bf16.mxu0 0
    %1606 = vmatpush2.bf16.msra.mxu0 %v1553
    %1607 = vmatprep.subr.bf16.mxu0 0
    %1608 = vmatpush2.bf16.msra.mxu0 %v1552
    %1609 = vmatprep.subr.bf16.mxu0 0
    %1610 = vmatpush2.bf16.msra.mxu0 %v1551
    %1611 = vmatprep.subr.bf16.mxu0 0
    %1612 = vmatpush2.bf16.msra.mxu0 %v1550
    %1613 = vmatprep.subr.bf16.mxu0 0
    %1614 = vmatpush2.bf16.msra.mxu0 %v1549
    %1615 = vmatprep.subr.bf16.mxu0 0
    %1616 = vmatpush2.bf16.msra.mxu0 %v1548
    %1617 = vmatprep.subr.bf16.mxu0 0
    %1618 = vmatpush2.bf16.msra.mxu0 %v1547
    %1619 = vmatprep.mubr.bf16.mxu0 %v1386
    %1620 = vmatmul.mubr.bf16.gmra.mxu0 %v1385
    %v1621 = vpop.f32.mrf.mxu0
    %v1622 = vadd.f32 %v1441, %v1621
    %v1623 = vpop.f32.mrf.mxu0
    %v1624 = vpop.f32.mrf.mxu0
    %v1625 = vpop.f32.mrf.mxu0
    %1626 = vdwg.mxu0
    %1627 = vmatprep.subr.bf16.mxu0 0
    %1628 = vmatpush1.bf16.msra.mxu0 %v1562
    %1629 = vmatprep.subr.bf16.mxu0 0
    %1630 = vmatpush1.bf16.msra.mxu0 %v1561
    %1631 = vmatprep.subr.bf16.mxu0 0
    %1632 = vmatpush1.bf16.msra.mxu0 %v1560
    %1633 = vmatprep.subr.bf16.mxu0 0
    %1634 = vmatpush1.bf16.msra.mxu0 %v1559
    %1635 = vmatprep.subr.bf16.mxu0 0
    %1636 = vmatpush1.bf16.msra.mxu0 %v1558
    %1637 = vmatprep.subr.bf16.mxu0 0
    %1638 = vmatpush1.bf16.msra.mxu0 %v1557
    %1639 = vmatprep.subr.bf16.mxu0 0
    %1640 = vmatpush1.bf16.msra.mxu0 %v1556
    %1641 = vmatprep.subr.bf16.mxu0 0
    %1642 = vmatpush1.bf16.msra.mxu0 %v1555
    %1643 = vmatprep.subr.bf16.mxu0 0
    %1644 = vmatpush2.bf16.msra.mxu0 0
    %1645 = vmatprep.subr.bf16.mxu0 0
    %1646 = vmatpush2.bf16.msra.mxu0 0
    %1647 = vmatprep.subr.bf16.mxu0 0
    %1648 = vmatpush2.bf16.msra.mxu0 0
    %1649 = vmatprep.subr.bf16.mxu0 0
    %1650 = vmatpush2.bf16.msra.mxu0 0
    %1651 = vmatprep.subr.bf16.mxu0 0
    %1652 = vmatpush2.bf16.msra.mxu0 0
    %1653 = vmatprep.subr.bf16.mxu0 0
    %1654 = vmatpush2.bf16.msra.mxu0 0
    %1655 = vmatprep.subr.bf16.mxu0 0
    %1656 = vmatpush2.bf16.msra.mxu0 0
    %1657 = vmatprep.subr.bf16.mxu0 0
    %1658 = vmatpush2.bf16.msra.mxu0 0
    %1659 = vmatprep.mubr.bf16.mxu0 0
    %1660 = vmatmul.mubr.bf16.gmra.mxu0 %v1387
    %v1661 = vpop.f32.mrf.mxu0
    %v1662 = vadd.f32 %v1622, %v1661
    %v1663 = vpop.f32.mrf.mxu0
    %v1664 = vpop.f32.mrf.mxu0
    %v1665 = vpop.f32.mrf.mxu0
    %1666 = vdwg.mxu0
    %v1667 = vtanh.pop %v1662
    %1668 = vst [vmem:[#allocation13] sm:$0xff] %v1667
    // Predicated region
    $region70: #{tpu_custom_call.1} parent=1 // pred_check
      _
    $region71: #{tpu_custom_call.1} parent=1 // pred_check_branch
      %1670 = sbr.rel (0) target = $region73
    $region72: #{tpu_custom_call.1} parent=1 // pred_region
      %s1672 = ssub.s32 128, 128
      %1673 = vsyncadd [#allocation4], %s1672
      %s1675 = sshll.u32 [#allocation13], 4
      %s1676 = int_to_ptr.vmem [resolvable:$true] %s1675
      %1678 = dma.vmem_to_hbm [thread:$0]  %s1676, 128, %s11, [#allocation4]
    $region73: #{tpu_custom_call.1} parent=1 // pred_fallthru
      _
    // Predicated region
    $region74: #{tpu_custom_call.1} parent=1 // pred_check
      _
    $region75: #{tpu_custom_call.1} parent=1 // pred_check_branch
      %1680 = sbr.rel (0) target = $region77
    $region76: #{tpu_custom_call.1} parent=1 // pred_region
      %1681 = dma.done [#allocation4], 128
    $region77: #{tpu_custom_call.1} parent=1 // pred_fallthru
      _
    %1682 = vsyncpa [#allocation3], 1
    %1683 = vsyncpa [#allocation6], 1
    %1684 = vsyncpa [#allocation9], 1
    %1685 = vsyncpa [#allocation12], 1
    %1686 = vsyncpa [#allocation4], 1

</llo_original>
